<compile_context>
chip_gen: v6e
topology: v6e:2x2x1
jax: 0.10.0
libtpu: 0.0.40
codegen_flags: <defaults>
</compile_context>

<pallas_src>
import functools

import jax
import jax.numpy as jnp
from jax.experimental import pallas as pl
from jax.experimental.pallas import tpu as pltpu


def _gru_net_kernel(x2d_ref, w_ih_rz_ref, w_ih_n_ref, b_rz_ref, b_in_ref,
                    w_hh_rz_ref, w_hh_n_ref, b_hhn_ref, w1_ref, w2_ref,
                    out_ref, *, seq_len, batch_p, hidden):
    """Whole forward pass in one invocation.

    x2d_ref:     (T*Bp, I)    time-major input, batch padded to Bp=8
    w_ih_rz_ref: (I, 2H) bf16 = weight_ih_l0.T columns for r,z
    w_ih_n_ref:  (I, H)  bf16 = weight_ih_l0.T columns for n
    b_rz_ref:    (1, 2H) f32  = b_ih_{r,z} + b_hh_{r,z}
    b_in_ref:    (1, H)  f32  = b_ih_n
    w_hh_rz_ref: (H, 2H) bf16 = weight_hh_l0.T columns for r,z
    w_hh_n_ref:  (H, H)  bf16 = weight_hh_l0.T columns for n
    b_hhn_ref:   (1, H)  f32  = b_hh_n (kept separate; multiplied by r)
    w1_ref:      (H, H//2) bf16 = fc1.weight.T
    w2_ref:      (H//2, C) bf16 = fc2.weight.T
    out_ref:     (Bp, C) f32
    """
    T, Bp, H = seq_len, batch_p, hidden

    # ---- Hoisted input projection for all T steps (off the serial chain). --
    xb = x2d_ref[...].astype(jnp.bfloat16)     # MXU ingests bf16 at default prec
    gi_rz = jnp.dot(xb, w_ih_rz_ref[...],
                    preferred_element_type=jnp.float32) + b_rz_ref[...]
    gi_n = jnp.dot(xb, w_ih_n_ref[...],
                   preferred_element_type=jnp.float32) + b_in_ref[...]

    w_hh_rz = w_hh_rz_ref[...]                           # loaded once
    w_hh_n = w_hh_n_ref[...]
    b_hhn = jnp.broadcast_to(b_hhn_ref[...], (Bp, H))    # hoisted broadcast

    # ---- Serial recurrence: two small lane-aligned dots + gate math. -------
    h = jnp.zeros((Bp, H), jnp.float32)
    for t in range(T):                     # static unroll; all slices static,
        gi_rz_t = gi_rz[t * Bp:(t + 1) * Bp, :]   # full 8-row sublane tiles
        gi_n_t = gi_n[t * Bp:(t + 1) * Bp, :]
        hb = h.astype(jnp.bfloat16)
        gh_rz = jnp.dot(hb, w_hh_rz, preferred_element_type=jnp.float32)
        gh_n = jnp.dot(hb, w_hh_n, preferred_element_type=jnp.float32)
        # One sigmoid on the combined r|z block (single EUP push), then split.
        rz = jax.nn.sigmoid(gi_rz_t + gh_rz)
        r = rz[:, :H]
        z = rz[:, H:]
        # PyTorch GRU: n = tanh(W_in x + b_in + r * (W_hn h + b_hn))
        n = jnp.tanh(gi_n_t + r * (gh_n + b_hhn))
        # (1-z)*n + z*h  ==  n + z*(h - n): one fewer VALU op on the carry path
        h = n + z * (h - n)

    # ---- FC head on the last hidden state: fc1 -> ReLU -> fc2. -------------
    h3 = jnp.maximum(
        jnp.dot(h.astype(jnp.bfloat16), w1_ref[...],
                preferred_element_type=jnp.float32), 0.0)
    out_ref[...] = jnp.dot(
        h3.astype(jnp.bfloat16), w2_ref[...],
        preferred_element_type=jnp.float32).astype(out_ref.dtype)


def gru_net_forward(x, w_ih, w_hh, b_ih, b_hh, w1, w2):
    """x: (T, B, I).  Weights pre-transposed to (in, out) layout.
    Returns (B, classes)."""
    T, B, I = x.shape
    H = w_hh.shape[0]
    C = w2.shape[1]
    Bp = 8                      # pad batch to one full sublane tile

    # Gate-split weights (lane-aligned gates) as bf16 stationary operands.
    w_ih_rz = w_ih[:, :2 * H].astype(jnp.bfloat16)
    w_ih_n = w_ih[:, 2 * H:].astype(jnp.bfloat16)
    w_hh_rz = w_hh[:, :2 * H].astype(jnp.bfloat16)
    w_hh_n = w_hh[:, 2 * H:].astype(jnp.bfloat16)
    w1b = w1.astype(jnp.bfloat16)
    w2b = w2.astype(jnp.bfloat16)

    # Pre-combined biases: r/z columns get b_ih + b_hh; the n column keeps
    # only b_ih (PyTorch applies b_hh_n inside the r-gated term).
    b_rz = (b_ih[:, :2 * H] + b_hh[:, :2 * H]).astype(jnp.float32)
    b_in = b_ih[:, 2 * H:].astype(jnp.float32)
    b_hhn = b_hh[:, 2 * H:].astype(jnp.float32)

    # Pad batch to Bp and flatten (T, Bp) for the one-pass input projection.
    x_p = jnp.zeros((T, Bp, I), jnp.float32).at[:, :B, :].set(x)
    x2d = x_p.reshape(T * Bp, I)

    flops = int(2 * T * Bp * I * 3 * H            # hoisted input projection
                + 2 * T * Bp * H * 3 * H          # recurrent matmuls
                + 12 * T * Bp * H                 # gate VALU math
                + 2 * Bp * H * (H // 2)           # fc1
                + 2 * Bp * (H // 2) * C)          # fc2
    transcendentals = int(T * Bp * 3 * H)
    bytes_accessed = int(
        x2d.size * 4
        + (w_ih.size + w_hh.size + w1.size + w2.size) * 2
        + (b_rz.size + b_in.size + b_hhn.size) * 4
        + Bp * C * 4)

    kernel = functools.partial(_gru_net_kernel, seq_len=T, batch_p=Bp,
                               hidden=H)
    vmem = pl.BlockSpec(memory_space=pltpu.MemorySpace.VMEM)

    out_p = pl.pallas_call(
        kernel,
        out_shape=jax.ShapeDtypeStruct((Bp, C), jnp.float32),
        in_specs=[vmem] * 10,     # everything resident in VMEM, loaded once
        out_specs=vmem,
        cost_estimate=pl.CostEstimate(flops=flops,
                                      transcendentals=transcendentals,
                                      bytes_accessed=bytes_accessed),
    )(x2d, w_ih_rz, w_ih_n, b_rz, b_in, w_hh_rz, w_hh_n, b_hhn, w1b, w2b)
    return out_p[:B]


def gru_net_reference(x, w_ih, w_hh, b_ih, b_hh, w1, w2):
    """Pure-JAX f32 reference mirroring torch.nn.GRU + Linear semantics."""
    T, B, I = x.shape
    H = w_hh.shape[0]

    def step(h_prev, x_t):
        gi = x_t @ w_ih + b_ih
        gh = h_prev @ w_hh + b_hh
        r = jax.nn.sigmoid(gi[:, :H] + gh[:, :H])
        z = jax.nn.sigmoid(gi[:, H:2 * H] + gh[:, H:2 * H])
        n = jnp.tanh(gi[:, 2 * H:] + r * gh[:, 2 * H:])
        h = (1.0 - z) * n + z * h_prev
        return h, None

    h0 = jnp.zeros((B, H), jnp.float32)
    h_last, _ = jax.lax.scan(step, h0, x)
    h3 = jnp.maximum(h_last @ w1, 0.0)
    return h3 @ w2


if __name__ == "__main__":
    # Hyperparameters implied by the module (small synthetic sizes).
    seq_len = 8
    batch = 2
    inp_dims = 16
    rnn_size = 32
    classes = 8

    key = jax.random.PRNGKey(0)
    ks = jax.random.split(key, 8)

    # Deterministic parameter init (PyTorch-style uniform(-1/sqrt(H), 1/sqrt(H))).
    bound = 1.0 / jnp.sqrt(jnp.float32(rnn_size))
    u = lambda k, shape, b: jax.random.uniform(k, shape, jnp.float32, -b, b)

    # Stored pre-transposed: (in_features, out_features).
    w_ih = u(ks[0], (inp_dims, 3 * rnn_size), bound)     # = weight_ih_l0.T
    w_hh = u(ks[1], (rnn_size, 3 * rnn_size), bound)     # = weight_hh_l0.T
    b_ih = u(ks[2], (1, 3 * rnn_size), bound)
    b_hh = u(ks[3], (1, 3 * rnn_size), bound)
    w1 = u(ks[4], (rnn_size, rnn_size // 2), bound)      # = fc1.weight.T
    w2 = u(ks[5], (rnn_size // 2, classes),
           1.0 / jnp.sqrt(jnp.float32(rnn_size // 2)))   # = fc2.weight.T

    # Input: (seq_len, batch, inp_dims), PyTorch nn.GRU default layout.
    x = jax.random.normal(ks[6], (seq_len, batch, inp_dims), jnp.float32)

    out = gru_net_forward(x, w_ih, w_hh, b_ih, b_hh, w1, w2)
    out = jax.block_until_ready(out)

    ref = jax.block_until_ready(
        gru_net_reference(x, w_ih, w_hh, b_ih, b_hh, w1, w2))

    assert out.shape == (batch, classes), out.shape
    # Kernel stores stationary operands in bf16 (the MXU demotes f32 operands
    # to bf16 at default precision anyway); compare against the f32 reference
    # with a bf16-level tolerance.
    assert jnp.allclose(out, ref, atol=2e-3, rtol=2e-3), (
        "Pallas output mismatch vs JAX reference")

    print("KERNEL_OK")
</pallas_src>

<mosaic_0001>
module attributes {stable_mosaic.version = 11 : i64} {
  func.func @_gru_net_kernel(%arg0: memref<64x16xf32, #tpu.memory_space<vmem>>, %arg1: memref<16x64xbf16, #tpu.memory_space<vmem>>, %arg2: memref<16x32xbf16, #tpu.memory_space<vmem>>, %arg3: memref<1x64xf32, #tpu.memory_space<vmem>>, %arg4: memref<1x32xf32, #tpu.memory_space<vmem>>, %arg5: memref<32x64xbf16, #tpu.memory_space<vmem>>, %arg6: memref<32x32xbf16, #tpu.memory_space<vmem>>, %arg7: memref<1x32xf32, #tpu.memory_space<vmem>>, %arg8: memref<32x16xbf16, #tpu.memory_space<vmem>>, %arg9: memref<16x8xbf16, #tpu.memory_space<vmem>>, %arg10: memref<8x8xf32, #tpu.memory_space<vmem>>) attributes {dimension_semantics = [], scalar_prefetch = 0 : i64, scratch_operands = 0 : i64, tpu.core_type = #tpu.core_type<tc>} {
    %c0 = arith.constant 0 : index
    %c0_0 = arith.constant 0 : index
    %0 = vector.load %arg0[%c0, %c0_0] : memref<64x16xf32, #tpu.memory_space<vmem>>, vector<64x16xf32>
    %1 = arith.truncf %0 : vector<64x16xf32> to vector<64x16xbf16>
    %c0_1 = arith.constant 0 : index
    %c0_2 = arith.constant 0 : index
    %2 = vector.load %arg1[%c0_1, %c0_2] : memref<16x64xbf16, #tpu.memory_space<vmem>>, vector<16x64xbf16>
    %cst = arith.constant dense<0.000000e+00> : vector<64x64xf32>
    %3 = tpu.matmul %1, %2, %cst {dimension_numbers = #tpu.dot_dimension_numbers<[1], [0], [0], [1], [0, 0, 1, 1], [], []>} : vector<64x16xbf16>, vector<16x64xbf16>, vector<64x64xf32> -> vector<64x64xf32>
    %c0_3 = arith.constant 0 : index
    %c0_4 = arith.constant 0 : index
    %4 = vector.load %arg3[%c0_3, %c0_4] : memref<1x64xf32, #tpu.memory_space<vmem>>, vector<1x64xf32>
    %5 = vector.broadcast %4 : vector<1x64xf32> to vector<64x64xf32>
    %6 = arith.addf %3, %5 : vector<64x64xf32>
    %c0_5 = arith.constant 0 : index
    %c0_6 = arith.constant 0 : index
    %7 = vector.load %arg2[%c0_5, %c0_6] : memref<16x32xbf16, #tpu.memory_space<vmem>>, vector<16x32xbf16>
    %cst_7 = arith.constant dense<0.000000e+00> : vector<64x32xf32>
    %8 = tpu.matmul %1, %7, %cst_7 {dimension_numbers = #tpu.dot_dimension_numbers<[1], [0], [0], [1], [0, 0, 1, 1], [], []>} : vector<64x16xbf16>, vector<16x32xbf16>, vector<64x32xf32> -> vector<64x32xf32>
    %c0_8 = arith.constant 0 : index
    %c0_9 = arith.constant 0 : index
    %9 = vector.load %arg4[%c0_8, %c0_9] : memref<1x32xf32, #tpu.memory_space<vmem>>, vector<1x32xf32>
    %10 = vector.broadcast %9 : vector<1x32xf32> to vector<64x32xf32>
    %11 = arith.addf %8, %10 : vector<64x32xf32>
    %c0_10 = arith.constant 0 : index
    %c0_11 = arith.constant 0 : index
    %12 = vector.load %arg5[%c0_10, %c0_11] : memref<32x64xbf16, #tpu.memory_space<vmem>>, vector<32x64xbf16>
    %c0_12 = arith.constant 0 : index
    %c0_13 = arith.constant 0 : index
    %13 = vector.load %arg6[%c0_12, %c0_13] : memref<32x32xbf16, #tpu.memory_space<vmem>>, vector<32x32xbf16>
    %c0_14 = arith.constant 0 : index
    %c0_15 = arith.constant 0 : index
    %14 = vector.load %arg7[%c0_14, %c0_15] : memref<1x32xf32, #tpu.memory_space<vmem>>, vector<1x32xf32>
    %15 = vector.shape_cast %14 : vector<1x32xf32> to vector<1x32xf32>
    %16 = vector.broadcast %15 : vector<1x32xf32> to vector<8x32xf32>
    %cst_16 = arith.constant 0.000000e+00 : f32
    %17 = vector.broadcast %cst_16 : f32 to vector<8x32xf32>
    %18 = vector.extract_strided_slice %6 {offsets = [0, 0], sizes = [8, 64], strides = [1, 1]} : vector<64x64xf32> to vector<8x64xf32>
    %19 = vector.extract_strided_slice %11 {offsets = [0, 0], sizes = [8, 32], strides = [1, 1]} : vector<64x32xf32> to vector<8x32xf32>
    %20 = arith.truncf %17 : vector<8x32xf32> to vector<8x32xbf16>
    %cst_17 = arith.constant dense<0.000000e+00> : vector<8x64xf32>
    %21 = tpu.matmul %20, %12, %cst_17 {dimension_numbers = #tpu.dot_dimension_numbers<[1], [0], [0], [1], [0, 0, 1, 1], [], []>} : vector<8x32xbf16>, vector<32x64xbf16>, vector<8x64xf32> -> vector<8x64xf32>
    %cst_18 = arith.constant dense<0.000000e+00> : vector<8x32xf32>
    %22 = tpu.matmul %20, %13, %cst_18 {dimension_numbers = #tpu.dot_dimension_numbers<[1], [0], [0], [1], [0, 0, 1, 1], [], []>} : vector<8x32xbf16>, vector<32x32xbf16>, vector<8x32xf32> -> vector<8x32xf32>
    %23 = arith.addf %18, %21 : vector<8x64xf32>
    %24 = arith.negf %23 : vector<8x64xf32>
    %25 = math.exp %24 : vector<8x64xf32>
    %cst_19 = arith.constant 1.000000e+00 : f32
    %26 = vector.broadcast %cst_19 : f32 to vector<8x64xf32>
    %27 = arith.addf %26, %25 : vector<8x64xf32>
    %28 = arith.divf %26, %27 : vector<8x64xf32>
    %29 = vector.extract_strided_slice %28 {offsets = [0, 0], sizes = [8, 32], strides = [1, 1]} : vector<8x64xf32> to vector<8x32xf32>
    %30 = vector.extract_strided_slice %28 {offsets = [0, 32], sizes = [8, 32], strides = [1, 1]} : vector<8x64xf32> to vector<8x32xf32>
    %31 = arith.addf %22, %16 : vector<8x32xf32>
    %32 = arith.mulf %29, %31 : vector<8x32xf32>
    %33 = arith.addf %19, %32 : vector<8x32xf32>
    %34 = math.tanh %33 : vector<8x32xf32>
    %35 = arith.subf %17, %34 : vector<8x32xf32>
    %36 = arith.mulf %30, %35 : vector<8x32xf32>
    %37 = arith.addf %34, %36 : vector<8x32xf32>
    %38 = vector.extract_strided_slice %6 {offsets = [8, 0], sizes = [8, 64], strides = [1, 1]} : vector<64x64xf32> to vector<8x64xf32>
    %39 = vector.extract_strided_slice %11 {offsets = [8, 0], sizes = [8, 32], strides = [1, 1]} : vector<64x32xf32> to vector<8x32xf32>
    %40 = arith.truncf %37 : vector<8x32xf32> to vector<8x32xbf16>
    %cst_20 = arith.constant dense<0.000000e+00> : vector<8x64xf32>
    %41 = tpu.matmul %40, %12, %cst_20 {dimension_numbers = #tpu.dot_dimension_numbers<[1], [0], [0], [1], [0, 0, 1, 1], [], []>} : vector<8x32xbf16>, vector<32x64xbf16>, vector<8x64xf32> -> vector<8x64xf32>
    %cst_21 = arith.constant dense<0.000000e+00> : vector<8x32xf32>
    %42 = tpu.matmul %40, %13, %cst_21 {dimension_numbers = #tpu.dot_dimension_numbers<[1], [0], [0], [1], [0, 0, 1, 1], [], []>} : vector<8x32xbf16>, vector<32x32xbf16>, vector<8x32xf32> -> vector<8x32xf32>
    %43 = arith.addf %38, %41 : vector<8x64xf32>
    %44 = arith.negf %43 : vector<8x64xf32>
    %45 = math.exp %44 : vector<8x64xf32>
    %cst_22 = arith.constant 1.000000e+00 : f32
    %46 = vector.broadcast %cst_22 : f32 to vector<8x64xf32>
    %47 = arith.addf %46, %45 : vector<8x64xf32>
    %48 = arith.divf %46, %47 : vector<8x64xf32>
    %49 = vector.extract_strided_slice %48 {offsets = [0, 0], sizes = [8, 32], strides = [1, 1]} : vector<8x64xf32> to vector<8x32xf32>
    %50 = vector.extract_strided_slice %48 {offsets = [0, 32], sizes = [8, 32], strides = [1, 1]} : vector<8x64xf32> to vector<8x32xf32>
    %51 = arith.addf %42, %16 : vector<8x32xf32>
    %52 = arith.mulf %49, %51 : vector<8x32xf32>
    %53 = arith.addf %39, %52 : vector<8x32xf32>
    %54 = math.tanh %53 : vector<8x32xf32>
    %55 = arith.subf %37, %54 : vector<8x32xf32>
    %56 = arith.mulf %50, %55 : vector<8x32xf32>
    %57 = arith.addf %54, %56 : vector<8x32xf32>
    %58 = vector.extract_strided_slice %6 {offsets = [16, 0], sizes = [8, 64], strides = [1, 1]} : vector<64x64xf32> to vector<8x64xf32>
    %59 = vector.extract_strided_slice %11 {offsets = [16, 0], sizes = [8, 32], strides = [1, 1]} : vector<64x32xf32> to vector<8x32xf32>
    %60 = arith.truncf %57 : vector<8x32xf32> to vector<8x32xbf16>
    %cst_23 = arith.constant dense<0.000000e+00> : vector<8x64xf32>
    %61 = tpu.matmul %60, %12, %cst_23 {dimension_numbers = #tpu.dot_dimension_numbers<[1], [0], [0], [1], [0, 0, 1, 1], [], []>} : vector<8x32xbf16>, vector<32x64xbf16>, vector<8x64xf32> -> vector<8x64xf32>
    %cst_24 = arith.constant dense<0.000000e+00> : vector<8x32xf32>
    %62 = tpu.matmul %60, %13, %cst_24 {dimension_numbers = #tpu.dot_dimension_numbers<[1], [0], [0], [1], [0, 0, 1, 1], [], []>} : vector<8x32xbf16>, vector<32x32xbf16>, vector<8x32xf32> -> vector<8x32xf32>
    %63 = arith.addf %58, %61 : vector<8x64xf32>
    %64 = arith.negf %63 : vector<8x64xf32>
    %65 = math.exp %64 : vector<8x64xf32>
    %cst_25 = arith.constant 1.000000e+00 : f32
    %66 = vector.broadcast %cst_25 : f32 to vector<8x64xf32>
    %67 = arith.addf %66, %65 : vector<8x64xf32>
    %68 = arith.divf %66, %67 : vector<8x64xf32>
    %69 = vector.extract_strided_slice %68 {offsets = [0, 0], sizes = [8, 32], strides = [1, 1]} : vector<8x64xf32> to vector<8x32xf32>
    %70 = vector.extract_strided_slice %68 {offsets = [0, 32], sizes = [8, 32], strides = [1, 1]} : vector<8x64xf32> to vector<8x32xf32>
    %71 = arith.addf %62, %16 : vector<8x32xf32>
    %72 = arith.mulf %69, %71 : vector<8x32xf32>
    %73 = arith.addf %59, %72 : vector<8x32xf32>
    %74 = math.tanh %73 : vector<8x32xf32>
    %75 = arith.subf %57, %74 : vector<8x32xf32>
    %76 = arith.mulf %70, %75 : vector<8x32xf32>
    %77 = arith.addf %74, %76 : vector<8x32xf32>
    %78 = vector.extract_strided_slice %6 {offsets = [24, 0], sizes = [8, 64], strides = [1, 1]} : vector<64x64xf32> to vector<8x64xf32>
    %79 = vector.extract_strided_slice %11 {offsets = [24, 0], sizes = [8, 32], strides = [1, 1]} : vector<64x32xf32> to vector<8x32xf32>
    %80 = arith.truncf %77 : vector<8x32xf32> to vector<8x32xbf16>
    %cst_26 = arith.constant dense<0.000000e+00> : vector<8x64xf32>
    %81 = tpu.matmul %80, %12, %cst_26 {dimension_numbers = #tpu.dot_dimension_numbers<[1], [0], [0], [1], [0, 0, 1, 1], [], []>} : vector<8x32xbf16>, vector<32x64xbf16>, vector<8x64xf32> -> vector<8x64xf32>
    %cst_27 = arith.constant dense<0.000000e+00> : vector<8x32xf32>
    %82 = tpu.matmul %80, %13, %cst_27 {dimension_numbers = #tpu.dot_dimension_numbers<[1], [0], [0], [1], [0, 0, 1, 1], [], []>} : vector<8x32xbf16>, vector<32x32xbf16>, vector<8x32xf32> -> vector<8x32xf32>
    %83 = arith.addf %78, %81 : vector<8x64xf32>
    %84 = arith.negf %83 : vector<8x64xf32>
    %85 = math.exp %84 : vector<8x64xf32>
    %cst_28 = arith.constant 1.000000e+00 : f32
    %86 = vector.broadcast %cst_28 : f32 to vector<8x64xf32>
    %87 = arith.addf %86, %85 : vector<8x64xf32>
    %88 = arith.divf %86, %87 : vector<8x64xf32>
    %89 = vector.extract_strided_slice %88 {offsets = [0, 0], sizes = [8, 32], strides = [1, 1]} : vector<8x64xf32> to vector<8x32xf32>
    %90 = vector.extract_strided_slice %88 {offsets = [0, 32], sizes = [8, 32], strides = [1, 1]} : vector<8x64xf32> to vector<8x32xf32>
    %91 = arith.addf %82, %16 : vector<8x32xf32>
    %92 = arith.mulf %89, %91 : vector<8x32xf32>
    %93 = arith.addf %79, %92 : vector<8x32xf32>
    %94 = math.tanh %93 : vector<8x32xf32>
    %95 = arith.subf %77, %94 : vector<8x32xf32>
    %96 = arith.mulf %90, %95 : vector<8x32xf32>
    %97 = arith.addf %94, %96 : vector<8x32xf32>
    %98 = vector.extract_strided_slice %6 {offsets = [32, 0], sizes = [8, 64], strides = [1, 1]} : vector<64x64xf32> to vector<8x64xf32>
    %99 = vector.extract_strided_slice %11 {offsets = [32, 0], sizes = [8, 32], strides = [1, 1]} : vector<64x32xf32> to vector<8x32xf32>
    %100 = arith.truncf %97 : vector<8x32xf32> to vector<8x32xbf16>
    %cst_29 = arith.constant dense<0.000000e+00> : vector<8x64xf32>
    %101 = tpu.matmul %100, %12, %cst_29 {dimension_numbers = #tpu.dot_dimension_numbers<[1], [0], [0], [1], [0, 0, 1, 1], [], []>} : vector<8x32xbf16>, vector<32x64xbf16>, vector<8x64xf32> -> vector<8x64xf32>
    %cst_30 = arith.constant dense<0.000000e+00> : vector<8x32xf32>
    %102 = tpu.matmul %100, %13, %cst_30 {dimension_numbers = #tpu.dot_dimension_numbers<[1], [0], [0], [1], [0, 0, 1, 1], [], []>} : vector<8x32xbf16>, vector<32x32xbf16>, vector<8x32xf32> -> vector<8x32xf32>
    %103 = arith.addf %98, %101 : vector<8x64xf32>
    %104 = arith.negf %103 : vector<8x64xf32>
    %105 = math.exp %104 : vector<8x64xf32>
    %cst_31 = arith.constant 1.000000e+00 : f32
    %106 = vector.broadcast %cst_31 : f32 to vector<8x64xf32>
    %107 = arith.addf %106, %105 : vector<8x64xf32>
    %108 = arith.divf %106, %107 : vector<8x64xf32>
    %109 = vector.extract_strided_slice %108 {offsets = [0, 0], sizes = [8, 32], strides = [1, 1]} : vector<8x64xf32> to vector<8x32xf32>
    %110 = vector.extract_strided_slice %108 {offsets = [0, 32], sizes = [8, 32], strides = [1, 1]} : vector<8x64xf32> to vector<8x32xf32>
    %111 = arith.addf %102, %16 : vector<8x32xf32>
    %112 = arith.mulf %109, %111 : vector<8x32xf32>
    %113 = arith.addf %99, %112 : vector<8x32xf32>
    %114 = math.tanh %113 : vector<8x32xf32>
    %115 = arith.subf %97, %114 : vector<8x32xf32>
    %116 = arith.mulf %110, %115 : vector<8x32xf32>
    %117 = arith.addf %114, %116 : vector<8x32xf32>
    %118 = vector.extract_strided_slice %6 {offsets = [40, 0], sizes = [8, 64], strides = [1, 1]} : vector<64x64xf32> to vector<8x64xf32>
    %119 = vector.extract_strided_slice %11 {offsets = [40, 0], sizes = [8, 32], strides = [1, 1]} : vector<64x32xf32> to vector<8x32xf32>
    %120 = arith.truncf %117 : vector<8x32xf32> to vector<8x32xbf16>
    %cst_32 = arith.constant dense<0.000000e+00> : vector<8x64xf32>
    %121 = tpu.matmul %120, %12, %cst_32 {dimension_numbers = #tpu.dot_dimension_numbers<[1], [0], [0], [1], [0, 0, 1, 1], [], []>} : vector<8x32xbf16>, vector<32x64xbf16>, vector<8x64xf32> -> vector<8x64xf32>
    %cst_33 = arith.constant dense<0.000000e+00> : vector<8x32xf32>
    %122 = tpu.matmul %120, %13, %cst_33 {dimension_numbers = #tpu.dot_dimension_numbers<[1], [0], [0], [1], [0, 0, 1, 1], [], []>} : vector<8x32xbf16>, vector<32x32xbf16>, vector<8x32xf32> -> vector<8x32xf32>
    %123 = arith.addf %118, %121 : vector<8x64xf32>
    %124 = arith.negf %123 : vector<8x64xf32>
    %125 = math.exp %124 : vector<8x64xf32>
    %cst_34 = arith.constant 1.000000e+00 : f32
    %126 = vector.broadcast %cst_34 : f32 to vector<8x64xf32>
    %127 = arith.addf %126, %125 : vector<8x64xf32>
    %128 = arith.divf %126, %127 : vector<8x64xf32>
    %129 = vector.extract_strided_slice %128 {offsets = [0, 0], sizes = [8, 32], strides = [1, 1]} : vector<8x64xf32> to vector<8x32xf32>
    %130 = vector.extract_strided_slice %128 {offsets = [0, 32], sizes = [8, 32], strides = [1, 1]} : vector<8x64xf32> to vector<8x32xf32>
    %131 = arith.addf %122, %16 : vector<8x32xf32>
    %132 = arith.mulf %129, %131 : vector<8x32xf32>
    %133 = arith.addf %119, %132 : vector<8x32xf32>
    %134 = math.tanh %133 : vector<8x32xf32>
    %135 = arith.subf %117, %134 : vector<8x32xf32>
    %136 = arith.mulf %130, %135 : vector<8x32xf32>
    %137 = arith.addf %134, %136 : vector<8x32xf32>
    %138 = vector.extract_strided_slice %6 {offsets = [48, 0], sizes = [8, 64], strides = [1, 1]} : vector<64x64xf32> to vector<8x64xf32>
    %139 = vector.extract_strided_slice %11 {offsets = [48, 0], sizes = [8, 32], strides = [1, 1]} : vector<64x32xf32> to vector<8x32xf32>
    %140 = arith.truncf %137 : vector<8x32xf32> to vector<8x32xbf16>
    %cst_35 = arith.constant dense<0.000000e+00> : vector<8x64xf32>
    %141 = tpu.matmul %140, %12, %cst_35 {dimension_numbers = #tpu.dot_dimension_numbers<[1], [0], [0], [1], [0, 0, 1, 1], [], []>} : vector<8x32xbf16>, vector<32x64xbf16>, vector<8x64xf32> -> vector<8x64xf32>
    %cst_36 = arith.constant dense<0.000000e+00> : vector<8x32xf32>
    %142 = tpu.matmul %140, %13, %cst_36 {dimension_numbers = #tpu.dot_dimension_numbers<[1], [0], [0], [1], [0, 0, 1, 1], [], []>} : vector<8x32xbf16>, vector<32x32xbf16>, vector<8x32xf32> -> vector<8x32xf32>
    %143 = arith.addf %138, %141 : vector<8x64xf32>
    %144 = arith.negf %143 : vector<8x64xf32>
    %145 = math.exp %144 : vector<8x64xf32>
    %cst_37 = arith.constant 1.000000e+00 : f32
    %146 = vector.broadcast %cst_37 : f32 to vector<8x64xf32>
    %147 = arith.addf %146, %145 : vector<8x64xf32>
    %148 = arith.divf %146, %147 : vector<8x64xf32>
    %149 = vector.extract_strided_slice %148 {offsets = [0, 0], sizes = [8, 32], strides = [1, 1]} : vector<8x64xf32> to vector<8x32xf32>
    %150 = vector.extract_strided_slice %148 {offsets = [0, 32], sizes = [8, 32], strides = [1, 1]} : vector<8x64xf32> to vector<8x32xf32>
    %151 = arith.addf %142, %16 : vector<8x32xf32>
    %152 = arith.mulf %149, %151 : vector<8x32xf32>
    %153 = arith.addf %139, %152 : vector<8x32xf32>
    %154 = math.tanh %153 : vector<8x32xf32>
    %155 = arith.subf %137, %154 : vector<8x32xf32>
    %156 = arith.mulf %150, %155 : vector<8x32xf32>
    %157 = arith.addf %154, %156 : vector<8x32xf32>
    %158 = vector.extract_strided_slice %6 {offsets = [56, 0], sizes = [8, 64], strides = [1, 1]} : vector<64x64xf32> to vector<8x64xf32>
    %159 = vector.extract_strided_slice %11 {offsets = [56, 0], sizes = [8, 32], strides = [1, 1]} : vector<64x32xf32> to vector<8x32xf32>
    %160 = arith.truncf %157 : vector<8x32xf32> to vector<8x32xbf16>
    %cst_38 = arith.constant dense<0.000000e+00> : vector<8x64xf32>
    %161 = tpu.matmul %160, %12, %cst_38 {dimension_numbers = #tpu.dot_dimension_numbers<[1], [0], [0], [1], [0, 0, 1, 1], [], []>} : vector<8x32xbf16>, vector<32x64xbf16>, vector<8x64xf32> -> vector<8x64xf32>
    %cst_39 = arith.constant dense<0.000000e+00> : vector<8x32xf32>
    %162 = tpu.matmul %160, %13, %cst_39 {dimension_numbers = #tpu.dot_dimension_numbers<[1], [0], [0], [1], [0, 0, 1, 1], [], []>} : vector<8x32xbf16>, vector<32x32xbf16>, vector<8x32xf32> -> vector<8x32xf32>
    %163 = arith.addf %158, %161 : vector<8x64xf32>
    %164 = arith.negf %163 : vector<8x64xf32>
    %165 = math.exp %164 : vector<8x64xf32>
    %cst_40 = arith.constant 1.000000e+00 : f32
    %166 = vector.broadcast %cst_40 : f32 to vector<8x64xf32>
    %167 = arith.addf %166, %165 : vector<8x64xf32>
    %168 = arith.divf %166, %167 : vector<8x64xf32>
    %169 = vector.extract_strided_slice %168 {offsets = [0, 0], sizes = [8, 32], strides = [1, 1]} : vector<8x64xf32> to vector<8x32xf32>
    %170 = vector.extract_strided_slice %168 {offsets = [0, 32], sizes = [8, 32], strides = [1, 1]} : vector<8x64xf32> to vector<8x32xf32>
    %171 = arith.addf %162, %16 : vector<8x32xf32>
    %172 = arith.mulf %169, %171 : vector<8x32xf32>
    %173 = arith.addf %159, %172 : vector<8x32xf32>
    %174 = math.tanh %173 : vector<8x32xf32>
    %175 = arith.subf %157, %174 : vector<8x32xf32>
    %176 = arith.mulf %170, %175 : vector<8x32xf32>
    %177 = arith.addf %174, %176 : vector<8x32xf32>
    %178 = arith.truncf %177 : vector<8x32xf32> to vector<8x32xbf16>
    %c0_41 = arith.constant 0 : index
    %c0_42 = arith.constant 0 : index
    %179 = vector.load %arg8[%c0_41, %c0_42] : memref<32x16xbf16, #tpu.memory_space<vmem>>, vector<32x16xbf16>
    %cst_43 = arith.constant dense<0.000000e+00> : vector<8x16xf32>
    %180 = tpu.matmul %178, %179, %cst_43 {dimension_numbers = #tpu.dot_dimension_numbers<[1], [0], [0], [1], [0, 0, 1, 1], [], []>} : vector<8x32xbf16>, vector<32x16xbf16>, vector<8x16xf32> -> vector<8x16xf32>
    %cst_44 = arith.constant 0.000000e+00 : f32
    %181 = vector.broadcast %cst_44 : f32 to vector<8x16xf32>
    %182 = arith.maximumf %180, %181 : vector<8x16xf32>
    %183 = arith.truncf %182 : vector<8x16xf32> to vector<8x16xbf16>
    %c0_45 = arith.constant 0 : index
    %c0_46 = arith.constant 0 : index
    %184 = vector.load %arg9[%c0_45, %c0_46] : memref<16x8xbf16, #tpu.memory_space<vmem>>, vector<16x8xbf16>
    %cst_47 = arith.constant dense<0.000000e+00> : vector<8x8xf32>
    %185 = tpu.matmul %183, %184, %cst_47 {dimension_numbers = #tpu.dot_dimension_numbers<[1], [0], [0], [1], [0, 0, 1, 1], [], []>} : vector<8x16xbf16>, vector<16x8xbf16>, vector<8x8xf32> -> vector<8x8xf32>
    %c0_48 = arith.constant 0 : index
    %c0_49 = arith.constant 0 : index
    %186 = vector.load %arg10[%c0_48, %c0_49] : memref<8x8xf32, #tpu.memory_space<vmem>>, vector<8x8xf32>
    tpu.vector_store %arg10[%c0_48, %c0_49], %185 {strides = array<i32>} : memref<8x8xf32, #tpu.memory_space<vmem>>, vector<8x8xf32>,
    return
  }
}

</mosaic_0001>

<llo_original>
// kernel: tpu_custom_call.1
$region0: #{tpu_custom_call.1}
  #allocation0 [shape = 'u32[]', space=smem, size = 0x4, offset = 0x4, fixed_abs, tag = 'smem constant byte address 0x4 - core index']
  #allocation1 [shape = 'u32[144,128]{1,0:T(1,128)}', space=vmem, size = 0x12000, scoped, tag = 'internal scratch']
  %s0 = inlined_call_operand.vmem [shape: f32[64,16], index: 0, kind: input, shape index: {}]
  %s1 = inlined_call_operand.vmem [shape: bf16[16,64], index: 1, kind: input, shape index: {}]
  %s2 = inlined_call_operand.vmem [shape: bf16[16,32], index: 2, kind: input, shape index: {}]
  %s3 = inlined_call_operand.vmem [shape: f32[1,64], index: 3, kind: input, shape index: {}]
  %s4 = inlined_call_operand.vmem [shape: f32[1,32], index: 4, kind: input, shape index: {}]
  %s5 = inlined_call_operand.vmem [shape: bf16[32,64], index: 5, kind: input, shape index: {}]
  %s6 = inlined_call_operand.vmem [shape: bf16[32,32], index: 6, kind: input, shape index: {}]
  %s7 = inlined_call_operand.vmem [shape: f32[1,32], index: 7, kind: input, shape index: {}]
  %s8 = inlined_call_operand.vmem [shape: bf16[32,16], index: 8, kind: input, shape index: {}]
  %s9 = inlined_call_operand.vmem [shape: bf16[16,8], index: 9, kind: input, shape index: {}]
  %s10 = inlined_call_operand.hbm [shape: f32[8,8], index: 10, kind: output, shape index: {}]
  %s11 = sld [smem:[#allocation0]]
  $region50: #{tpu_custom_call.1} parent=0
    _
  %s13 = ssub.s32 1, %s11
  %s14 = scalar_select 0, %s13, %s11
  $region1: #{tpu_custom_call.1} parent=0
    #allocation2 [shape = 'u8[4096]{0}', space=vmem, size = 0x1000, scoped, tag = 'output window, operand 0, single buffered']
    #allocation3 [shape = 's32[1]{0}', space=sflag, size = 0x4, scoped, tag = 'scoped memory for tpu_custom_call.1']
    %15 = vsyncpa [#allocation3], 0
    // Predicated region
    $region2: #{tpu_custom_call.1} parent=1 // pred_check
      _
    $region3: #{tpu_custom_call.1} parent=1 // pred_check_branch
      %17 = sbr.rel (0) target = $region5
    $region4: #{tpu_custom_call.1} parent=1 // pred_region
      _
    $region5: #{tpu_custom_call.1} parent=1 // pred_fallthru
      _
    // Predicated region
    $region6: #{tpu_custom_call.1} parent=1 // pred_check
      _
    $region7: #{tpu_custom_call.1} parent=1 // pred_check_branch
      %19 = sbr.rel (0) target = $region9
    $region8: #{tpu_custom_call.1} parent=1 // pred_region
      _
    $region9: #{tpu_custom_call.1} parent=1 // pred_fallthru
      _
    // Predicated region
    $region10: #{tpu_custom_call.1} parent=1 // pred_check
      _
    $region11: #{tpu_custom_call.1} parent=1 // pred_check_branch
      %21 = sbr.rel (0) target = $region13
    $region12: #{tpu_custom_call.1} parent=1 // pred_region
      _
    $region13: #{tpu_custom_call.1} parent=1 // pred_fallthru
      _
    // Predicated region
    $region14: #{tpu_custom_call.1} parent=1 // pred_check
      _
    $region15: #{tpu_custom_call.1} parent=1 // pred_check_branch
      %23 = sbr.rel (0) target = $region17
    $region16: #{tpu_custom_call.1} parent=1 // pred_region
      _
    $region17: #{tpu_custom_call.1} parent=1 // pred_fallthru
      _
    // Predicated region
    $region18: #{tpu_custom_call.1} parent=1 // pred_check
      _
    $region19: #{tpu_custom_call.1} parent=1 // pred_check_branch
      %25 = sbr.rel (0) target = $region21
    $region20: #{tpu_custom_call.1} parent=1 // pred_region
      _
    $region21: #{tpu_custom_call.1} parent=1 // pred_fallthru
      _
    // Predicated region
    $region22: #{tpu_custom_call.1} parent=1 // pred_check
      _
    $region23: #{tpu_custom_call.1} parent=1 // pred_check_branch
      %27 = sbr.rel (0) target = $region25
    $region24: #{tpu_custom_call.1} parent=1 // pred_region
      _
    $region25: #{tpu_custom_call.1} parent=1 // pred_fallthru
      _
    // Predicated region
    $region26: #{tpu_custom_call.1} parent=1 // pred_check
      _
    $region27: #{tpu_custom_call.1} parent=1 // pred_check_branch
      %29 = sbr.rel (0) target = $region29
    $region28: #{tpu_custom_call.1} parent=1 // pred_region
      _
    $region29: #{tpu_custom_call.1} parent=1 // pred_fallthru
      _
    // Predicated region
    $region30: #{tpu_custom_call.1} parent=1 // pred_check
      _
    $region31: #{tpu_custom_call.1} parent=1 // pred_check_branch
      %31 = sbr.rel (0) target = $region33
    $region32: #{tpu_custom_call.1} parent=1 // pred_region
      _
    $region33: #{tpu_custom_call.1} parent=1 // pred_fallthru
      _
    // Predicated region
    $region34: #{tpu_custom_call.1} parent=1 // pred_check
      _
    $region35: #{tpu_custom_call.1} parent=1 // pred_check_branch
      %33 = sbr.rel (0) target = $region37
    $region36: #{tpu_custom_call.1} parent=1 // pred_region
      _
    $region37: #{tpu_custom_call.1} parent=1 // pred_fallthru
      _
    // Predicated region
    $region38: #{tpu_custom_call.1} parent=1 // pred_check
      _
    $region39: #{tpu_custom_call.1} parent=1 // pred_check_branch
      %35 = sbr.rel (0) target = $region41
    $region40: #{tpu_custom_call.1} parent=1 // pred_region
      _
    $region41: #{tpu_custom_call.1} parent=1 // pred_fallthru
      _
    %v37 = vld [vmem:[%s0] sm:$0xff]
    %v38 = vld [vmem:[%s0 + $0x8] sm:$0xff]
    %v39 = vld [vmem:[%s0 + $0x10] sm:$0xff]
    %v40 = vld [vmem:[%s0 + $0x18] sm:$0xff]
    %v41 = vld [vmem:[%s0 + $0x20] sm:$0xff]
    %v42 = vld [vmem:[%s0 + $0x28] sm:$0xff]
    %v43 = vld [vmem:[%s0 + $0x30] sm:$0xff]
    %v44 = vld [vmem:[%s0 + $0x38] sm:$0xff]
    %v45 = vpack.c.bf16 %v38, %v37
    %v46 = vpack.c.bf16 %v40, %v39
    %v47 = vpack.c.bf16 %v42, %v41
    %v48 = vpack.c.bf16 %v44, %v43
    %v49 = vld [vmem:[%s1] sm:$0xf]
    %v50 = vld [vmem:[%s1 + $0x4] sm:$0xf]
    %v51 = vld [vmem:[%s3] sm:$0x1]
    %v53 = vlaneseq
    %v54 = vshrl.u32 %v53, 7
    %v55 = vsub.s32 0, %v54
    %v56 = vrot.slane %v51, %v55
    %v60 = vunpack.c.l.b16 %v49
    %v61 = vunpack.c.l.b16 %v50
    %v62 = vpack.c.b16 %v61, %v60
    %vm64 = vcmask 130048
    %v66 = vsel %vm64, %v45, 0
    %v69 = vsel %vm64, %v46, 0
    %v72 = vsel %vm64, %v47, 0
    %v75 = vsel %vm64, %v48, 0
    %77 = vmatprep.subr.bf16.mxu0 0
    %78 = vmatpush1.bf16.msra.mxu0 0
    %79 = vmatprep.subr.bf16.mxu0 0
    %80 = vmatpush1.bf16.msra.mxu0 0
    %81 = vmatprep.subr.bf16.mxu0 0
    %82 = vmatpush1.bf16.msra.mxu0 0
    %83 = vmatprep.subr.bf16.mxu0 0
    %84 = vmatpush1.bf16.msra.mxu0 0
    %85 = vmatprep.subr.bf16.mxu0 0
    %86 = vmatpush1.bf16.msra.mxu0 0
    %87 = vmatprep.subr.bf16.mxu0 0
    %88 = vmatpush1.bf16.msra.mxu0 0
    %89 = vmatprep.subr.bf16.mxu0 0
    %90 = vmatpush1.bf16.msra.mxu0 0
    %91 = vmatprep.subr.bf16.mxu0 0
    %92 = vmatpush1.bf16.msra.mxu0 %v62
    %93 = vmatprep.subr.bf16.mxu0 0
    %94 = vmatpush2.bf16.msra.mxu0 0
    %95 = vmatprep.subr.bf16.mxu0 0
    %96 = vmatpush2.bf16.msra.mxu0 0
    %97 = vmatprep.subr.bf16.mxu0 0
    %98 = vmatpush2.bf16.msra.mxu0 0
    %99 = vmatprep.subr.bf16.mxu0 0
    %100 = vmatpush2.bf16.msra.mxu0 0
    %101 = vmatprep.subr.bf16.mxu0 0
    %102 = vmatpush2.bf16.msra.mxu0 0
    %103 = vmatprep.subr.bf16.mxu0 0
    %104 = vmatpush2.bf16.msra.mxu0 0
    %105 = vmatprep.subr.bf16.mxu0 0
    %106 = vmatpush2.bf16.msra.mxu0 0
    %107 = vmatprep.subr.bf16.mxu0 0
    %108 = vmatpush2.bf16.msra.mxu0 0
    %109 = vmatprep.mubr.bf16.mxu0 0
    %110 = vmatmul.mubr.bf16.gmra.mxu0 %v66
    %v111 = vpop.f32.mrf.mxu0
    %v112 = vadd.f32 %v56, %v111
    %v113 = vpop.f32.mrf.mxu0
    %v114 = vpop.f32.mrf.mxu0
    %v115 = vadd.f32 %v56, %v114
    %v116 = vpop.f32.mrf.mxu0
    %117 = vmatprep.mubr.bf16.mxu0 0
    %118 = vmatmul.mubr.bf16.gmra.mxu0 %v69
    %v119 = vpop.f32.mrf.mxu0
    %v120 = vadd.f32 %v56, %v119
    %v121 = vpop.f32.mrf.mxu0
    %v122 = vpop.f32.mrf.mxu0
    %v123 = vadd.f32 %v56, %v122
    %v124 = vpop.f32.mrf.mxu0
    %125 = vmatprep.mubr.bf16.mxu0 0
    %126 = vmatmul.mubr.bf16.gmra.mxu0 %v72
    %v127 = vpop.f32.mrf.mxu0
    %v128 = vadd.f32 %v56, %v127
    %v129 = vpop.f32.mrf.mxu0
    %v130 = vpop.f32.mrf.mxu0
    %v131 = vadd.f32 %v56, %v130
    %v132 = vpop.f32.mrf.mxu0
    %133 = vmatprep.mubr.bf16.mxu0 0
    %134 = vmatmul.mubr.bf16.gmra.mxu0 %v75
    %v135 = vpop.f32.mrf.mxu0
    %v136 = vadd.f32 %v56, %v135
    %v137 = vpop.f32.mrf.mxu0
    %v138 = vpop.f32.mrf.mxu0
    %v139 = vadd.f32 %v56, %v138
    %v140 = vpop.f32.mrf.mxu0
    %141 = vdwg.mxu0
    %v142 = vld [vmem:[%s2] sm:$0xf]
    %v143 = vld [vmem:[%s2 + $0x4] sm:$0xf]
    %v144 = vld [vmem:[%s4] sm:$0x1]
    %v146 = vlaneseq
    %v147 = vshrl.u32 %v146, 7
    %v148 = vsub.s32 0, %v147
    %v149 = vrot.slane %v144, %v148
    %v153 = vunpack.c.l.b16 %v142
    %v154 = vunpack.c.l.b16 %v143
    %v155 = vpack.c.b16 %v154, %v153
    %157 = vmatprep.subr.bf16.mxu0 0
    %158 = vmatpush1.bf16.msra.mxu0 0
    %159 = vmatprep.subr.bf16.mxu0 0
    %160 = vmatpush1.bf16.msra.mxu0 0
    %161 = vmatprep.subr.bf16.mxu0 0
    %162 = vmatpush1.bf16.msra.mxu0 0
    %163 = vmatprep.subr.bf16.mxu0 0
    %164 = vmatpush1.bf16.msra.mxu0 0
    %165 = vmatprep.subr.bf16.mxu0 0
    %166 = vmatpush1.bf16.msra.mxu0 0
    %167 = vmatprep.subr.bf16.mxu0 0
    %168 = vmatpush1.bf16.msra.mxu0 0
    %169 = vmatprep.subr.bf16.mxu0 0
    %170 = vmatpush1.bf16.msra.mxu0 0
    %171 = vmatprep.subr.bf16.mxu0 0
    %172 = vmatpush1.bf16.msra.mxu0 %v155
    %173 = vmatprep.subr.bf16.mxu0 0
    %174 = vmatpush2.bf16.msra.mxu0 0
    %175 = vmatprep.subr.bf16.mxu0 0
    %176 = vmatpush2.bf16.msra.mxu0 0
    %177 = vmatprep.subr.bf16.mxu0 0
    %178 = vmatpush2.bf16.msra.mxu0 0
    %179 = vmatprep.subr.bf16.mxu0 0
    %180 = vmatpush2.bf16.msra.mxu0 0
    %181 = vmatprep.subr.bf16.mxu0 0
    %182 = vmatpush2.bf16.msra.mxu0 0
    %183 = vmatprep.subr.bf16.mxu0 0
    %184 = vmatpush2.bf16.msra.mxu0 0
    %185 = vmatprep.subr.bf16.mxu0 0
    %186 = vmatpush2.bf16.msra.mxu0 0
    %187 = vmatprep.subr.bf16.mxu0 0
    %188 = vmatpush2.bf16.msra.mxu0 0
    %189 = vmatprep.mubr.bf16.mxu0 0
    %190 = vmatmul.mubr.bf16.gmra.mxu0 %v66
    %v191 = vpop.f32.mrf.mxu0
    %v192 = vadd.f32 %v149, %v191
    %v193 = vpop.f32.mrf.mxu0
    %v194 = vpop.f32.mrf.mxu0
    %v195 = vadd.f32 %v149, %v194
    %v196 = vpop.f32.mrf.mxu0
    %197 = vmatprep.mubr.bf16.mxu0 0
    %198 = vmatmul.mubr.bf16.gmra.mxu0 %v69
    %v199 = vpop.f32.mrf.mxu0
    %v200 = vadd.f32 %v149, %v199
    %v201 = vpop.f32.mrf.mxu0
    %v202 = vpop.f32.mrf.mxu0
    %v203 = vadd.f32 %v149, %v202
    %v204 = vpop.f32.mrf.mxu0
    %205 = vmatprep.mubr.bf16.mxu0 0
    %206 = vmatmul.mubr.bf16.gmra.mxu0 %v72
    %v207 = vpop.f32.mrf.mxu0
    %v208 = vadd.f32 %v149, %v207
    %v209 = vpop.f32.mrf.mxu0
    %v210 = vpop.f32.mrf.mxu0
    %v211 = vadd.f32 %v149, %v210
    %v212 = vpop.f32.mrf.mxu0
    %213 = vmatprep.mubr.bf16.mxu0 0
    %214 = vmatmul.mubr.bf16.gmra.mxu0 %v75
    %v215 = vpop.f32.mrf.mxu0
    %v216 = vadd.f32 %v149, %v215
    %v217 = vpop.f32.mrf.mxu0
    %v218 = vpop.f32.mrf.mxu0
    %v219 = vadd.f32 %v149, %v218
    %v220 = vpop.f32.mrf.mxu0
    %221 = vdwg.mxu0
    %v222 = vld [vmem:[%s5] sm:$0xf]
    %v223 = vld [vmem:[%s5 + $0x4] sm:$0xf]
    %v224 = vld [vmem:[%s5 + $0x8] sm:$0xf]
    %v225 = vld [vmem:[%s5 + $0xc] sm:$0xf]
    %v226 = vld [vmem:[%s6] sm:$0xf]
    %v227 = vld [vmem:[%s6 + $0x4] sm:$0xf]
    %v228 = vld [vmem:[%s6 + $0x8] sm:$0xf]
    %v229 = vld [vmem:[%s6 + $0xc] sm:$0xf]
    %v230 = vld [vmem:[%s7] sm:$0x1]
    %v232 = vlaneseq
    %v233 = vshrl.u32 %v232, 7
    %v234 = vsub.s32 0, %v233
    %v235 = vrot.slane %v230, %v234
    %v241 = vunpack.c.l.b16 %v222
    %v242 = vunpack.c.l.b16 %v223
    %v243 = vunpack.c.l.b16 %v224
    %v244 = vunpack.c.l.b16 %v225
    %v245 = vpack.c.b16 %v242, %v241
    %v246 = vpack.c.b16 %v244, %v243
    %vm249 = vcmask 261120
    %v251 = vsel %vm249, 0, 0
    %253 = vmatprep.subr.bf16.mxu0 0
    %254 = vmatpush1.bf16.msra.mxu0 0
    %255 = vmatprep.subr.bf16.mxu0 0
    %256 = vmatpush1.bf16.msra.mxu0 0
    %257 = vmatprep.subr.bf16.mxu0 0
    %258 = vmatpush1.bf16.msra.mxu0 0
    %259 = vmatprep.subr.bf16.mxu0 0
    %260 = vmatpush1.bf16.msra.mxu0 0
    %261 = vmatprep.subr.bf16.mxu0 0
    %262 = vmatpush1.bf16.msra.mxu0 0
    %263 = vmatprep.subr.bf16.mxu0 0
    %264 = vmatpush1.bf16.msra.mxu0 0
    %265 = vmatprep.subr.bf16.mxu0 0
    %266 = vmatpush1.bf16.msra.mxu0 %v246
    %267 = vmatprep.subr.bf16.mxu0 0
    %268 = vmatpush1.bf16.msra.mxu0 %v245
    %269 = vmatprep.subr.bf16.mxu0 0
    %270 = vmatpush2.bf16.msra.mxu0 0
    %271 = vmatprep.subr.bf16.mxu0 0
    %272 = vmatpush2.bf16.msra.mxu0 0
    %273 = vmatprep.subr.bf16.mxu0 0
    %274 = vmatpush2.bf16.msra.mxu0 0
    %275 = vmatprep.subr.bf16.mxu0 0
    %276 = vmatpush2.bf16.msra.mxu0 0
    %277 = vmatprep.subr.bf16.mxu0 0
    %278 = vmatpush2.bf16.msra.mxu0 0
    %279 = vmatprep.subr.bf16.mxu0 0
    %280 = vmatpush2.bf16.msra.mxu0 0
    %281 = vmatprep.subr.bf16.mxu0 0
    %282 = vmatpush2.bf16.msra.mxu0 0
    %283 = vmatprep.subr.bf16.mxu0 0
    %284 = vmatpush2.bf16.msra.mxu0 0
    %285 = vmatprep.mubr.bf16.mxu0 0
    %286 = vmatmul.mubr.bf16.gmra.mxu0 %v251
    %v287 = vpop.f32.mrf.mxu0
    %v288 = vadd.f32 0.0, %v287
    %v289 = vpop.f32.mrf.mxu0
    %v290 = vpop.f32.mrf.mxu0
    %v291 = vpop.f32.mrf.mxu0
    %292 = vdwg.mxu0
    %v293 = vadd.f32 %v112, %v288
    %v294 = vxor.u32 %v293, 2147483648
    %v295 = vmul.f32 %v294, 1.442695
    %v296 = vpow.pop %v295
    %v297 = vadd.f32 %v296, 1.0
    %v298 = vrcp.pop %v297
    %v299 = vmul.f32 1.0, %v298
    %v304 = vunpack.c.l.b16 %v226
    %v305 = vunpack.c.l.b16 %v227
    %v306 = vunpack.c.l.b16 %v228
    %v307 = vunpack.c.l.b16 %v229
    %v308 = vpack.c.b16 %v305, %v304
    %v309 = vpack.c.b16 %v307, %v306
    %312 = vmatprep.subr.bf16.mxu0 0
    %313 = vmatpush1.bf16.msra.mxu0 0
    %314 = vmatprep.subr.bf16.mxu0 0
    %315 = vmatpush1.bf16.msra.mxu0 0
    %316 = vmatprep.subr.bf16.mxu0 0
    %317 = vmatpush1.bf16.msra.mxu0 0
    %318 = vmatprep.subr.bf16.mxu0 0
    %319 = vmatpush1.bf16.msra.mxu0 0
    %320 = vmatprep.subr.bf16.mxu0 0
    %321 = vmatpush1.bf16.msra.mxu0 0
    %322 = vmatprep.subr.bf16.mxu0 0
    %323 = vmatpush1.bf16.msra.mxu0 0
    %324 = vmatprep.subr.bf16.mxu0 0
    %325 = vmatpush1.bf16.msra.mxu0 %v309
    %326 = vmatprep.subr.bf16.mxu0 0
    %327 = vmatpush1.bf16.msra.mxu0 %v308
    %328 = vmatprep.subr.bf16.mxu0 0
    %329 = vmatpush2.bf16.msra.mxu0 0
    %330 = vmatprep.subr.bf16.mxu0 0
    %331 = vmatpush2.bf16.msra.mxu0 0
    %332 = vmatprep.subr.bf16.mxu0 0
    %333 = vmatpush2.bf16.msra.mxu0 0
    %334 = vmatprep.subr.bf16.mxu0 0
    %335 = vmatpush2.bf16.msra.mxu0 0
    %336 = vmatprep.subr.bf16.mxu0 0
    %337 = vmatpush2.bf16.msra.mxu0 0
    %338 = vmatprep.subr.bf16.mxu0 0
    %339 = vmatpush2.bf16.msra.mxu0 0
    %340 = vmatprep.subr.bf16.mxu0 0
    %341 = vmatpush2.bf16.msra.mxu0 0
    %342 = vmatprep.subr.bf16.mxu0 0
    %343 = vmatpush2.bf16.msra.mxu0 0
    %344 = vmatprep.mubr.bf16.mxu0 0
    %345 = vmatmul.mubr.bf16.gmra.mxu0 %v251
    %v346 = vpop.f32.mrf.mxu0
    %v347 = vadd.f32 %v235, %v346
    %v348 = vpop.f32.mrf.mxu0
    %v349 = vpop.f32.mrf.mxu0
    %v350 = vpop.f32.mrf.mxu0
    %351 = vdwg.mxu0
    %v352 = vmul.f32 %v299, %v347
    %v353 = vadd.f32 %v192, %v352
    %v354 = vtanh.pop %v353
    %v355 = vsub.f32 0.0, %v354
    %357 = vrot.lane.b32.xlu0 %v355, 32
    %v358 = vpop.permute.xlu0 %357
    %v360 = vmul.f32 %v299, %v358
    %362 = vrot.lane.b32.xlu0 %v360, 96
    %v363 = vpop.permute.xlu0 %362
    %v365 = vadd.f32 %v354, %v363
    %v366 = vpack.c.bf16 %v365, %v365
    %v368 = vsel %vm249, %v366, 0
    %370 = vmatprep.subr.bf16.mxu0 0
    %371 = vmatpush1.bf16.msra.mxu0 0
    %372 = vmatprep.subr.bf16.mxu0 0
    %373 = vmatpush1.bf16.msra.mxu0 0
    %374 = vmatprep.subr.bf16.mxu0 0
    %375 = vmatpush1.bf16.msra.mxu0 0
    %376 = vmatprep.subr.bf16.mxu0 0
    %377 = vmatpush1.bf16.msra.mxu0 0
    %378 = vmatprep.subr.bf16.mxu0 0
    %379 = vmatpush1.bf16.msra.mxu0 0
    %380 = vmatprep.subr.bf16.mxu0 0
    %381 = vmatpush1.bf16.msra.mxu0 0
    %382 = vmatprep.subr.bf16.mxu0 0
    %383 = vmatpush1.bf16.msra.mxu0 %v246
    %384 = vmatprep.subr.bf16.mxu0 0
    %385 = vmatpush1.bf16.msra.mxu0 %v245
    %386 = vmatprep.subr.bf16.mxu0 0
    %387 = vmatpush2.bf16.msra.mxu0 0
    %388 = vmatprep.subr.bf16.mxu0 0
    %389 = vmatpush2.bf16.msra.mxu0 0
    %390 = vmatprep.subr.bf16.mxu0 0
    %391 = vmatpush2.bf16.msra.mxu0 0
    %392 = vmatprep.subr.bf16.mxu0 0
    %393 = vmatpush2.bf16.msra.mxu0 0
    %394 = vmatprep.subr.bf16.mxu0 0
    %395 = vmatpush2.bf16.msra.mxu0 0
    %396 = vmatprep.subr.bf16.mxu0 0
    %397 = vmatpush2.bf16.msra.mxu0 0
    %398 = vmatprep.subr.bf16.mxu0 0
    %399 = vmatpush2.bf16.msra.mxu0 0
    %400 = vmatprep.subr.bf16.mxu0 0
    %401 = vmatpush2.bf16.msra.mxu0 0
    %402 = vmatprep.mubr.bf16.mxu0 0
    %403 = vmatmul.mubr.bf16.gmra.mxu0 %v368
    %v404 = vpop.f32.mrf.mxu0
    %v405 = vadd.f32 0.0, %v404
    %v406 = vpop.f32.mrf.mxu0
    %v407 = vpop.f32.mrf.mxu0
    %v408 = vpop.f32.mrf.mxu0
    %409 = vdwg.mxu0
    %v410 = vadd.f32 %v115, %v405
    %v411 = vxor.u32 %v410, 2147483648
    %v412 = vmul.f32 %v411, 1.442695
    %v413 = vpow.pop %v412
    %v414 = vadd.f32 %v413, 1.0
    %v415 = vrcp.pop %v414
    %v416 = vmul.f32 1.0, %v415
    %417 = vmatprep.subr.bf16.mxu0 0
    %418 = vmatpush1.bf16.msra.mxu0 0
    %419 = vmatprep.subr.bf16.mxu0 0
    %420 = vmatpush1.bf16.msra.mxu0 0
    %421 = vmatprep.subr.bf16.mxu0 0
    %422 = vmatpush1.bf16.msra.mxu0 0
    %423 = vmatprep.subr.bf16.mxu0 0
    %424 = vmatpush1.bf16.msra.mxu0 0
    %425 = vmatprep.subr.bf16.mxu0 0
    %426 = vmatpush1.bf16.msra.mxu0 0
    %427 = vmatprep.subr.bf16.mxu0 0
    %428 = vmatpush1.bf16.msra.mxu0 0
    %429 = vmatprep.subr.bf16.mxu0 0
    %430 = vmatpush1.bf16.msra.mxu0 %v309
    %431 = vmatprep.subr.bf16.mxu0 0
    %432 = vmatpush1.bf16.msra.mxu0 %v308
    %433 = vmatprep.subr.bf16.mxu0 0
    %434 = vmatpush2.bf16.msra.mxu0 0
    %435 = vmatprep.subr.bf16.mxu0 0
    %436 = vmatpush2.bf16.msra.mxu0 0
    %437 = vmatprep.subr.bf16.mxu0 0
    %438 = vmatpush2.bf16.msra.mxu0 0
    %439 = vmatprep.subr.bf16.mxu0 0
    %440 = vmatpush2.bf16.msra.mxu0 0
    %441 = vmatprep.subr.bf16.mxu0 0
    %442 = vmatpush2.bf16.msra.mxu0 0
    %443 = vmatprep.subr.bf16.mxu0 0
    %444 = vmatpush2.bf16.msra.mxu0 0
    %445 = vmatprep.subr.bf16.mxu0 0
    %446 = vmatpush2.bf16.msra.mxu0 0
    %447 = vmatprep.subr.bf16.mxu0 0
    %448 = vmatpush2.bf16.msra.mxu0 0
    %449 = vmatprep.mubr.bf16.mxu0 0
    %450 = vmatmul.mubr.bf16.gmra.mxu0 %v368
    %v451 = vpop.f32.mrf.mxu0
    %v452 = vadd.f32 %v235, %v451
    %v453 = vpop.f32.mrf.mxu0
    %v454 = vpop.f32.mrf.mxu0
    %v455 = vpop.f32.mrf.mxu0
    %456 = vdwg.mxu0
    %v457 = vmul.f32 %v416, %v452
    %v458 = vadd.f32 %v195, %v457
    %v459 = vtanh.pop %v458
    %v460 = vsub.f32 %v365, %v459
    %462 = vrot.lane.b32.xlu0 %v460, 32
    %v463 = vpop.permute.xlu0 %462
    %v465 = vmul.f32 %v416, %v463
    %467 = vrot.lane.b32.xlu0 %v465, 96
    %v468 = vpop.permute.xlu0 %467
    %v470 = vadd.f32 %v459, %v468
    %v471 = vpack.c.bf16 %v470, %v470
    %v473 = vsel %vm249, %v471, 0
    %475 = vmatprep.subr.bf16.mxu0 0
    %476 = vmatpush1.bf16.msra.mxu0 0
    %477 = vmatprep.subr.bf16.mxu0 0
    %478 = vmatpush1.bf16.msra.mxu0 0
    %479 = vmatprep.subr.bf16.mxu0 0
    %480 = vmatpush1.bf16.msra.mxu0 0
    %481 = vmatprep.subr.bf16.mxu0 0
    %482 = vmatpush1.bf16.msra.mxu0 0
    %483 = vmatprep.subr.bf16.mxu0 0
    %484 = vmatpush1.bf16.msra.mxu0 0
    %485 = vmatprep.subr.bf16.mxu0 0
    %486 = vmatpush1.bf16.msra.mxu0 0
    %487 = vmatprep.subr.bf16.mxu0 0
    %488 = vmatpush1.bf16.msra.mxu0 %v246
    %489 = vmatprep.subr.bf16.mxu0 0
    %490 = vmatpush1.bf16.msra.mxu0 %v245
    %491 = vmatprep.subr.bf16.mxu0 0
    %492 = vmatpush2.bf16.msra.mxu0 0
    %493 = vmatprep.subr.bf16.mxu0 0
    %494 = vmatpush2.bf16.msra.mxu0 0
    %495 = vmatprep.subr.bf16.mxu0 0
    %496 = vmatpush2.bf16.msra.mxu0 0
    %497 = vmatprep.subr.bf16.mxu0 0
    %498 = vmatpush2.bf16.msra.mxu0 0
    %499 = vmatprep.subr.bf16.mxu0 0
    %500 = vmatpush2.bf16.msra.mxu0 0
    %501 = vmatprep.subr.bf16.mxu0 0
    %502 = vmatpush2.bf16.msra.mxu0 0
    %503 = vmatprep.subr.bf16.mxu0 0
    %504 = vmatpush2.bf16.msra.mxu0 0
    %505 = vmatprep.subr.bf16.mxu0 0
    %506 = vmatpush2.bf16.msra.mxu0 0
    %507 = vmatprep.mubr.bf16.mxu0 0
    %508 = vmatmul.mubr.bf16.gmra.mxu0 %v473
    %v509 = vpop.f32.mrf.mxu0
    %v510 = vadd.f32 0.0, %v509
    %v511 = vpop.f32.mrf.mxu0
    %v512 = vpop.f32.mrf.mxu0
    %v513 = vpop.f32.mrf.mxu0
    %514 = vdwg.mxu0
    %v515 = vadd.f32 %v120, %v510
    %v516 = vxor.u32 %v515, 2147483648
    %v517 = vmul.f32 %v516, 1.442695
    %v518 = vpow.pop %v517
    %v519 = vadd.f32 %v518, 1.0
    %v520 = vrcp.pop %v519
    %v521 = vmul.f32 1.0, %v520
    %522 = vmatprep.subr.bf16.mxu0 0
    %523 = vmatpush1.bf16.msra.mxu0 0
    %524 = vmatprep.subr.bf16.mxu0 0
    %525 = vmatpush1.bf16.msra.mxu0 0
    %526 = vmatprep.subr.bf16.mxu0 0
    %527 = vmatpush1.bf16.msra.mxu0 0
    %528 = vmatprep.subr.bf16.mxu0 0
    %529 = vmatpush1.bf16.msra.mxu0 0
    %530 = vmatprep.subr.bf16.mxu0 0
    %531 = vmatpush1.bf16.msra.mxu0 0
    %532 = vmatprep.subr.bf16.mxu0 0
    %533 = vmatpush1.bf16.msra.mxu0 0
    %534 = vmatprep.subr.bf16.mxu0 0
    %535 = vmatpush1.bf16.msra.mxu0 %v309
    %536 = vmatprep.subr.bf16.mxu0 0
    %537 = vmatpush1.bf16.msra.mxu0 %v308
    %538 = vmatprep.subr.bf16.mxu0 0
    %539 = vmatpush2.bf16.msra.mxu0 0
    %540 = vmatprep.subr.bf16.mxu0 0
    %541 = vmatpush2.bf16.msra.mxu0 0
    %542 = vmatprep.subr.bf16.mxu0 0
    %543 = vmatpush2.bf16.msra.mxu0 0
    %544 = vmatprep.subr.bf16.mxu0 0
    %545 = vmatpush2.bf16.msra.mxu0 0
    %546 = vmatprep.subr.bf16.mxu0 0
    %547 = vmatpush2.bf16.msra.mxu0 0
    %548 = vmatprep.subr.bf16.mxu0 0
    %549 = vmatpush2.bf16.msra.mxu0 0
    %550 = vmatprep.subr.bf16.mxu0 0
    %551 = vmatpush2.bf16.msra.mxu0 0
    %552 = vmatprep.subr.bf16.mxu0 0
    %553 = vmatpush2.bf16.msra.mxu0 0
    %554 = vmatprep.mubr.bf16.mxu0 0
    %555 = vmatmul.mubr.bf16.gmra.mxu0 %v473
    %v556 = vpop.f32.mrf.mxu0
    %v557 = vadd.f32 %v235, %v556
    %v558 = vpop.f32.mrf.mxu0
    %v559 = vpop.f32.mrf.mxu0
    %v560 = vpop.f32.mrf.mxu0
    %561 = vdwg.mxu0
    %v562 = vmul.f32 %v521, %v557
    %v563 = vadd.f32 %v200, %v562
    %v564 = vtanh.pop %v563
    %v565 = vsub.f32 %v470, %v564
    %567 = vrot.lane.b32.xlu0 %v565, 32
    %v568 = vpop.permute.xlu0 %567
    %v570 = vmul.f32 %v521, %v568
    %572 = vrot.lane.b32.xlu0 %v570, 96
    %v573 = vpop.permute.xlu0 %572
    %v575 = vadd.f32 %v564, %v573
    %v576 = vpack.c.bf16 %v575, %v575
    %v578 = vsel %vm249, %v576, 0
    %580 = vmatprep.subr.bf16.mxu0 0
    %581 = vmatpush1.bf16.msra.mxu0 0
    %582 = vmatprep.subr.bf16.mxu0 0
    %583 = vmatpush1.bf16.msra.mxu0 0
    %584 = vmatprep.subr.bf16.mxu0 0
    %585 = vmatpush1.bf16.msra.mxu0 0
    %586 = vmatprep.subr.bf16.mxu0 0
    %587 = vmatpush1.bf16.msra.mxu0 0
    %588 = vmatprep.subr.bf16.mxu0 0
    %589 = vmatpush1.bf16.msra.mxu0 0
    %590 = vmatprep.subr.bf16.mxu0 0
    %591 = vmatpush1.bf16.msra.mxu0 0
    %592 = vmatprep.subr.bf16.mxu0 0
    %593 = vmatpush1.bf16.msra.mxu0 %v246
    %594 = vmatprep.subr.bf16.mxu0 0
    %595 = vmatpush1.bf16.msra.mxu0 %v245
    %596 = vmatprep.subr.bf16.mxu0 0
    %597 = vmatpush2.bf16.msra.mxu0 0
    %598 = vmatprep.subr.bf16.mxu0 0
    %599 = vmatpush2.bf16.msra.mxu0 0
    %600 = vmatprep.subr.bf16.mxu0 0
    %601 = vmatpush2.bf16.msra.mxu0 0
    %602 = vmatprep.subr.bf16.mxu0 0
    %603 = vmatpush2.bf16.msra.mxu0 0
    %604 = vmatprep.subr.bf16.mxu0 0
    %605 = vmatpush2.bf16.msra.mxu0 0
    %606 = vmatprep.subr.bf16.mxu0 0
    %607 = vmatpush2.bf16.msra.mxu0 0
    %608 = vmatprep.subr.bf16.mxu0 0
    %609 = vmatpush2.bf16.msra.mxu0 0
    %610 = vmatprep.subr.bf16.mxu0 0
    %611 = vmatpush2.bf16.msra.mxu0 0
    %612 = vmatprep.mubr.bf16.mxu0 0
    %613 = vmatmul.mubr.bf16.gmra.mxu0 %v578
    %v614 = vpop.f32.mrf.mxu0
    %v615 = vadd.f32 0.0, %v614
    %v616 = vpop.f32.mrf.mxu0
    %v617 = vpop.f32.mrf.mxu0
    %v618 = vpop.f32.mrf.mxu0
    %619 = vdwg.mxu0
    %v620 = vadd.f32 %v123, %v615
    %v621 = vxor.u32 %v620, 2147483648
    %v622 = vmul.f32 %v621, 1.442695
    %v623 = vpow.pop %v622
    %v624 = vadd.f32 %v623, 1.0
    %v625 = vrcp.pop %v624
    %v626 = vmul.f32 1.0, %v625
    %627 = vmatprep.subr.bf16.mxu0 0
    %628 = vmatpush1.bf16.msra.mxu0 0
    %629 = vmatprep.subr.bf16.mxu0 0
    %630 = vmatpush1.bf16.msra.mxu0 0
    %631 = vmatprep.subr.bf16.mxu0 0
    %632 = vmatpush1.bf16.msra.mxu0 0
    %633 = vmatprep.subr.bf16.mxu0 0
    %634 = vmatpush1.bf16.msra.mxu0 0
    %635 = vmatprep.subr.bf16.mxu0 0
    %636 = vmatpush1.bf16.msra.mxu0 0
    %637 = vmatprep.subr.bf16.mxu0 0
    %638 = vmatpush1.bf16.msra.mxu0 0
    %639 = vmatprep.subr.bf16.mxu0 0
    %640 = vmatpush1.bf16.msra.mxu0 %v309
    %641 = vmatprep.subr.bf16.mxu0 0
    %642 = vmatpush1.bf16.msra.mxu0 %v308
    %643 = vmatprep.subr.bf16.mxu0 0
    %644 = vmatpush2.bf16.msra.mxu0 0
    %645 = vmatprep.subr.bf16.mxu0 0
    %646 = vmatpush2.bf16.msra.mxu0 0
    %647 = vmatprep.subr.bf16.mxu0 0
    %648 = vmatpush2.bf16.msra.mxu0 0
    %649 = vmatprep.subr.bf16.mxu0 0
    %650 = vmatpush2.bf16.msra.mxu0 0
    %651 = vmatprep.subr.bf16.mxu0 0
    %652 = vmatpush2.bf16.msra.mxu0 0
    %653 = vmatprep.subr.bf16.mxu0 0
    %654 = vmatpush2.bf16.msra.mxu0 0
    %655 = vmatprep.subr.bf16.mxu0 0
    %656 = vmatpush2.bf16.msra.mxu0 0
    %657 = vmatprep.subr.bf16.mxu0 0
    %658 = vmatpush2.bf16.msra.mxu0 0
    %659 = vmatprep.mubr.bf16.mxu0 0
    %660 = vmatmul.mubr.bf16.gmra.mxu0 %v578
    %v661 = vpop.f32.mrf.mxu0
    %v662 = vadd.f32 %v235, %v661
    %v663 = vpop.f32.mrf.mxu0
    %v664 = vpop.f32.mrf.mxu0
    %v665 = vpop.f32.mrf.mxu0
    %666 = vdwg.mxu0
    %v667 = vmul.f32 %v626, %v662
    %v668 = vadd.f32 %v203, %v667
    %v669 = vtanh.pop %v668
    %v670 = vsub.f32 %v575, %v669
    %672 = vrot.lane.b32.xlu0 %v670, 32
    %v673 = vpop.permute.xlu0 %672
    %v675 = vmul.f32 %v626, %v673
    %677 = vrot.lane.b32.xlu0 %v675, 96
    %v678 = vpop.permute.xlu0 %677
    %v680 = vadd.f32 %v669, %v678
    %v681 = vpack.c.bf16 %v680, %v680
    %v683 = vsel %vm249, %v681, 0
    %685 = vmatprep.subr.bf16.mxu0 0
    %686 = vmatpush1.bf16.msra.mxu0 0
    %687 = vmatprep.subr.bf16.mxu0 0
    %688 = vmatpush1.bf16.msra.mxu0 0
    %689 = vmatprep.subr.bf16.mxu0 0
    %690 = vmatpush1.bf16.msra.mxu0 0
    %691 = vmatprep.subr.bf16.mxu0 0
    %692 = vmatpush1.bf16.msra.mxu0 0
    %693 = vmatprep.subr.bf16.mxu0 0
    %694 = vmatpush1.bf16.msra.mxu0 0
    %695 = vmatprep.subr.bf16.mxu0 0
    %696 = vmatpush1.bf16.msra.mxu0 0
    %697 = vmatprep.subr.bf16.mxu0 0
    %698 = vmatpush1.bf16.msra.mxu0 %v246
    %699 = vmatprep.subr.bf16.mxu0 0
    %700 = vmatpush1.bf16.msra.mxu0 %v245
    %701 = vmatprep.subr.bf16.mxu0 0
    %702 = vmatpush2.bf16.msra.mxu0 0
    %703 = vmatprep.subr.bf16.mxu0 0
    %704 = vmatpush2.bf16.msra.mxu0 0
    %705 = vmatprep.subr.bf16.mxu0 0
    %706 = vmatpush2.bf16.msra.mxu0 0
    %707 = vmatprep.subr.bf16.mxu0 0
    %708 = vmatpush2.bf16.msra.mxu0 0
    %709 = vmatprep.subr.bf16.mxu0 0
    %710 = vmatpush2.bf16.msra.mxu0 0
    %711 = vmatprep.subr.bf16.mxu0 0
    %712 = vmatpush2.bf16.msra.mxu0 0
    %713 = vmatprep.subr.bf16.mxu0 0
    %714 = vmatpush2.bf16.msra.mxu0 0
    %715 = vmatprep.subr.bf16.mxu0 0
    %716 = vmatpush2.bf16.msra.mxu0 0
    %717 = vmatprep.mubr.bf16.mxu0 0
    %718 = vmatmul.mubr.bf16.gmra.mxu0 %v683
    %v719 = vpop.f32.mrf.mxu0
    %v720 = vadd.f32 0.0, %v719
    %v721 = vpop.f32.mrf.mxu0
    %v722 = vpop.f32.mrf.mxu0
    %v723 = vpop.f32.mrf.mxu0
    %724 = vdwg.mxu0
    %v725 = vadd.f32 %v128, %v720
    %v726 = vxor.u32 %v725, 2147483648
    %v727 = vmul.f32 %v726, 1.442695
    %v728 = vpow.pop %v727
    %v729 = vadd.f32 %v728, 1.0
    %v730 = vrcp.pop %v729
    %v731 = vmul.f32 1.0, %v730
    %732 = vmatprep.subr.bf16.mxu0 0
    %733 = vmatpush1.bf16.msra.mxu0 0
    %734 = vmatprep.subr.bf16.mxu0 0
    %735 = vmatpush1.bf16.msra.mxu0 0
    %736 = vmatprep.subr.bf16.mxu0 0
    %737 = vmatpush1.bf16.msra.mxu0 0
    %738 = vmatprep.subr.bf16.mxu0 0
    %739 = vmatpush1.bf16.msra.mxu0 0
    %740 = vmatprep.subr.bf16.mxu0 0
    %741 = vmatpush1.bf16.msra.mxu0 0
    %742 = vmatprep.subr.bf16.mxu0 0
    %743 = vmatpush1.bf16.msra.mxu0 0
    %744 = vmatprep.subr.bf16.mxu0 0
    %745 = vmatpush1.bf16.msra.mxu0 %v309
    %746 = vmatprep.subr.bf16.mxu0 0
    %747 = vmatpush1.bf16.msra.mxu0 %v308
    %748 = vmatprep.subr.bf16.mxu0 0
    %749 = vmatpush2.bf16.msra.mxu0 0
    %750 = vmatprep.subr.bf16.mxu0 0
    %751 = vmatpush2.bf16.msra.mxu0 0
    %752 = vmatprep.subr.bf16.mxu0 0
    %753 = vmatpush2.bf16.msra.mxu0 0
    %754 = vmatprep.subr.bf16.mxu0 0
    %755 = vmatpush2.bf16.msra.mxu0 0
    %756 = vmatprep.subr.bf16.mxu0 0
    %757 = vmatpush2.bf16.msra.mxu0 0
    %758 = vmatprep.subr.bf16.mxu0 0
    %759 = vmatpush2.bf16.msra.mxu0 0
    %760 = vmatprep.subr.bf16.mxu0 0
    %761 = vmatpush2.bf16.msra.mxu0 0
    %762 = vmatprep.subr.bf16.mxu0 0
    %763 = vmatpush2.bf16.msra.mxu0 0
    %764 = vmatprep.mubr.bf16.mxu0 0
    %765 = vmatmul.mubr.bf16.gmra.mxu0 %v683
    %v766 = vpop.f32.mrf.mxu0
    %v767 = vadd.f32 %v235, %v766
    %v768 = vpop.f32.mrf.mxu0
    %v769 = vpop.f32.mrf.mxu0
    %v770 = vpop.f32.mrf.mxu0
    %771 = vdwg.mxu0
    %v772 = vmul.f32 %v731, %v767
    %v773 = vadd.f32 %v208, %v772
    %v774 = vtanh.pop %v773
    %v775 = vsub.f32 %v680, %v774
    %777 = vrot.lane.b32.xlu0 %v775, 32
    %v778 = vpop.permute.xlu0 %777
    %v780 = vmul.f32 %v731, %v778
    %782 = vrot.lane.b32.xlu0 %v780, 96
    %v783 = vpop.permute.xlu0 %782
    %v785 = vadd.f32 %v774, %v783
    %v786 = vpack.c.bf16 %v785, %v785
    %v788 = vsel %vm249, %v786, 0
    %790 = vmatprep.subr.bf16.mxu0 0
    %791 = vmatpush1.bf16.msra.mxu0 0
    %792 = vmatprep.subr.bf16.mxu0 0
    %793 = vmatpush1.bf16.msra.mxu0 0
    %794 = vmatprep.subr.bf16.mxu0 0
    %795 = vmatpush1.bf16.msra.mxu0 0
    %796 = vmatprep.subr.bf16.mxu0 0
    %797 = vmatpush1.bf16.msra.mxu0 0
    %798 = vmatprep.subr.bf16.mxu0 0
    %799 = vmatpush1.bf16.msra.mxu0 0
    %800 = vmatprep.subr.bf16.mxu0 0
    %801 = vmatpush1.bf16.msra.mxu0 0
    %802 = vmatprep.subr.bf16.mxu0 0
    %803 = vmatpush1.bf16.msra.mxu0 %v246
    %804 = vmatprep.subr.bf16.mxu0 0
    %805 = vmatpush1.bf16.msra.mxu0 %v245
    %806 = vmatprep.subr.bf16.mxu0 0
    %807 = vmatpush2.bf16.msra.mxu0 0
    %808 = vmatprep.subr.bf16.mxu0 0
    %809 = vmatpush2.bf16.msra.mxu0 0
    %810 = vmatprep.subr.bf16.mxu0 0
    %811 = vmatpush2.bf16.msra.mxu0 0
    %812 = vmatprep.subr.bf16.mxu0 0
    %813 = vmatpush2.bf16.msra.mxu0 0
    %814 = vmatprep.subr.bf16.mxu0 0
    %815 = vmatpush2.bf16.msra.mxu0 0
    %816 = vmatprep.subr.bf16.mxu0 0
    %817 = vmatpush2.bf16.msra.mxu0 0
    %818 = vmatprep.subr.bf16.mxu0 0
    %819 = vmatpush2.bf16.msra.mxu0 0
    %820 = vmatprep.subr.bf16.mxu0 0
    %821 = vmatpush2.bf16.msra.mxu0 0
    %822 = vmatprep.mubr.bf16.mxu0 0
    %823 = vmatmul.mubr.bf16.gmra.mxu0 %v788
    %v824 = vpop.f32.mrf.mxu0
    %v825 = vadd.f32 0.0, %v824
    %v826 = vpop.f32.mrf.mxu0
    %v827 = vpop.f32.mrf.mxu0
    %v828 = vpop.f32.mrf.mxu0
    %829 = vdwg.mxu0
    %v830 = vadd.f32 %v131, %v825
    %v831 = vxor.u32 %v830, 2147483648
    %v832 = vmul.f32 %v831, 1.442695
    %v833 = vpow.pop %v832
    %v834 = vadd.f32 %v833, 1.0
    %v835 = vrcp.pop %v834
    %v836 = vmul.f32 1.0, %v835
    %837 = vmatprep.subr.bf16.mxu0 0
    %838 = vmatpush1.bf16.msra.mxu0 0
    %839 = vmatprep.subr.bf16.mxu0 0
    %840 = vmatpush1.bf16.msra.mxu0 0
    %841 = vmatprep.subr.bf16.mxu0 0
    %842 = vmatpush1.bf16.msra.mxu0 0
    %843 = vmatprep.subr.bf16.mxu0 0
    %844 = vmatpush1.bf16.msra.mxu0 0
    %845 = vmatprep.subr.bf16.mxu0 0
    %846 = vmatpush1.bf16.msra.mxu0 0
    %847 = vmatprep.subr.bf16.mxu0 0
    %848 = vmatpush1.bf16.msra.mxu0 0
    %849 = vmatprep.subr.bf16.mxu0 0
    %850 = vmatpush1.bf16.msra.mxu0 %v309
    %851 = vmatprep.subr.bf16.mxu0 0
    %852 = vmatpush1.bf16.msra.mxu0 %v308
    %853 = vmatprep.subr.bf16.mxu0 0
    %854 = vmatpush2.bf16.msra.mxu0 0
    %855 = vmatprep.subr.bf16.mxu0 0
    %856 = vmatpush2.bf16.msra.mxu0 0
    %857 = vmatprep.subr.bf16.mxu0 0
    %858 = vmatpush2.bf16.msra.mxu0 0
    %859 = vmatprep.subr.bf16.mxu0 0
    %860 = vmatpush2.bf16.msra.mxu0 0
    %861 = vmatprep.subr.bf16.mxu0 0
    %862 = vmatpush2.bf16.msra.mxu0 0
    %863 = vmatprep.subr.bf16.mxu0 0
    %864 = vmatpush2.bf16.msra.mxu0 0
    %865 = vmatprep.subr.bf16.mxu0 0
    %866 = vmatpush2.bf16.msra.mxu0 0
    %867 = vmatprep.subr.bf16.mxu0 0
    %868 = vmatpush2.bf16.msra.mxu0 0
    %869 = vmatprep.mubr.bf16.mxu0 0
    %870 = vmatmul.mubr.bf16.gmra.mxu0 %v788
    %v871 = vpop.f32.mrf.mxu0
    %v872 = vadd.f32 %v235, %v871
    %v873 = vpop.f32.mrf.mxu0
    %v874 = vpop.f32.mrf.mxu0
    %v875 = vpop.f32.mrf.mxu0
    %876 = vdwg.mxu0
    %v877 = vmul.f32 %v836, %v872
    %v878 = vadd.f32 %v211, %v877
    %v879 = vtanh.pop %v878
    %v880 = vsub.f32 %v785, %v879
    %882 = vrot.lane.b32.xlu0 %v880, 32
    %v883 = vpop.permute.xlu0 %882
    %v885 = vmul.f32 %v836, %v883
    %887 = vrot.lane.b32.xlu0 %v885, 96
    %v888 = vpop.permute.xlu0 %887
    %v890 = vadd.f32 %v879, %v888
    %v891 = vpack.c.bf16 %v890, %v890
    %v893 = vsel %vm249, %v891, 0
    %895 = vmatprep.subr.bf16.mxu0 0
    %896 = vmatpush1.bf16.msra.mxu0 0
    %897 = vmatprep.subr.bf16.mxu0 0
    %898 = vmatpush1.bf16.msra.mxu0 0
    %899 = vmatprep.subr.bf16.mxu0 0
    %900 = vmatpush1.bf16.msra.mxu0 0
    %901 = vmatprep.subr.bf16.mxu0 0
    %902 = vmatpush1.bf16.msra.mxu0 0
    %903 = vmatprep.subr.bf16.mxu0 0
    %904 = vmatpush1.bf16.msra.mxu0 0
    %905 = vmatprep.subr.bf16.mxu0 0
    %906 = vmatpush1.bf16.msra.mxu0 0
    %907 = vmatprep.subr.bf16.mxu0 0
    %908 = vmatpush1.bf16.msra.mxu0 %v246
    %909 = vmatprep.subr.bf16.mxu0 0
    %910 = vmatpush1.bf16.msra.mxu0 %v245
    %911 = vmatprep.subr.bf16.mxu0 0
    %912 = vmatpush2.bf16.msra.mxu0 0
    %913 = vmatprep.subr.bf16.mxu0 0
    %914 = vmatpush2.bf16.msra.mxu0 0
    %915 = vmatprep.subr.bf16.mxu0 0
    %916 = vmatpush2.bf16.msra.mxu0 0
    %917 = vmatprep.subr.bf16.mxu0 0
    %918 = vmatpush2.bf16.msra.mxu0 0
    %919 = vmatprep.subr.bf16.mxu0 0
    %920 = vmatpush2.bf16.msra.mxu0 0
    %921 = vmatprep.subr.bf16.mxu0 0
    %922 = vmatpush2.bf16.msra.mxu0 0
    %923 = vmatprep.subr.bf16.mxu0 0
    %924 = vmatpush2.bf16.msra.mxu0 0
    %925 = vmatprep.subr.bf16.mxu0 0
    %926 = vmatpush2.bf16.msra.mxu0 0
    %927 = vmatprep.mubr.bf16.mxu0 0
    %928 = vmatmul.mubr.bf16.gmra.mxu0 %v893
    %v929 = vpop.f32.mrf.mxu0
    %v930 = vadd.f32 0.0, %v929
    %v931 = vpop.f32.mrf.mxu0
    %v932 = vpop.f32.mrf.mxu0
    %v933 = vpop.f32.mrf.mxu0
    %934 = vdwg.mxu0
    %v935 = vadd.f32 %v136, %v930
    %v936 = vxor.u32 %v935, 2147483648
    %v937 = vmul.f32 %v936, 1.442695
    %v938 = vpow.pop %v937
    %v939 = vadd.f32 %v938, 1.0
    %v940 = vrcp.pop %v939
    %v941 = vmul.f32 1.0, %v940
    %942 = vmatprep.subr.bf16.mxu0 0
    %943 = vmatpush1.bf16.msra.mxu0 0
    %944 = vmatprep.subr.bf16.mxu0 0
    %945 = vmatpush1.bf16.msra.mxu0 0
    %946 = vmatprep.subr.bf16.mxu0 0
    %947 = vmatpush1.bf16.msra.mxu0 0
    %948 = vmatprep.subr.bf16.mxu0 0
    %949 = vmatpush1.bf16.msra.mxu0 0
    %950 = vmatprep.subr.bf16.mxu0 0
    %951 = vmatpush1.bf16.msra.mxu0 0
    %952 = vmatprep.subr.bf16.mxu0 0
    %953 = vmatpush1.bf16.msra.mxu0 0
    %954 = vmatprep.subr.bf16.mxu0 0
    %955 = vmatpush1.bf16.msra.mxu0 %v309
    %956 = vmatprep.subr.bf16.mxu0 0
    %957 = vmatpush1.bf16.msra.mxu0 %v308
    %958 = vmatprep.subr.bf16.mxu0 0
    %959 = vmatpush2.bf16.msra.mxu0 0
    %960 = vmatprep.subr.bf16.mxu0 0
    %961 = vmatpush2.bf16.msra.mxu0 0
    %962 = vmatprep.subr.bf16.mxu0 0
    %963 = vmatpush2.bf16.msra.mxu0 0
    %964 = vmatprep.subr.bf16.mxu0 0
    %965 = vmatpush2.bf16.msra.mxu0 0
    %966 = vmatprep.subr.bf16.mxu0 0
    %967 = vmatpush2.bf16.msra.mxu0 0
    %968 = vmatprep.subr.bf16.mxu0 0
    %969 = vmatpush2.bf16.msra.mxu0 0
    %970 = vmatprep.subr.bf16.mxu0 0
    %971 = vmatpush2.bf16.msra.mxu0 0
    %972 = vmatprep.subr.bf16.mxu0 0
    %973 = vmatpush2.bf16.msra.mxu0 0
    %974 = vmatprep.mubr.bf16.mxu0 0
    %975 = vmatmul.mubr.bf16.gmra.mxu0 %v893
    %v976 = vpop.f32.mrf.mxu0
    %v977 = vadd.f32 %v235, %v976
    %v978 = vpop.f32.mrf.mxu0
    %v979 = vpop.f32.mrf.mxu0
    %v980 = vpop.f32.mrf.mxu0
    %981 = vdwg.mxu0
    %v982 = vmul.f32 %v941, %v977
    %v983 = vadd.f32 %v216, %v982
    %v984 = vtanh.pop %v983
    %v985 = vsub.f32 %v890, %v984
    %987 = vrot.lane.b32.xlu0 %v985, 32
    %v988 = vpop.permute.xlu0 %987
    %v990 = vmul.f32 %v941, %v988
    %992 = vrot.lane.b32.xlu0 %v990, 96
    %v993 = vpop.permute.xlu0 %992
    %v995 = vadd.f32 %v984, %v993
    %v996 = vpack.c.bf16 %v995, %v995
    %v998 = vsel %vm249, %v996, 0
    %1000 = vmatprep.subr.bf16.mxu0 0
    %1001 = vmatpush1.bf16.msra.mxu0 0
    %1002 = vmatprep.subr.bf16.mxu0 0
    %1003 = vmatpush1.bf16.msra.mxu0 0
    %1004 = vmatprep.subr.bf16.mxu0 0
    %1005 = vmatpush1.bf16.msra.mxu0 0
    %1006 = vmatprep.subr.bf16.mxu0 0
    %1007 = vmatpush1.bf16.msra.mxu0 0
    %1008 = vmatprep.subr.bf16.mxu0 0
    %1009 = vmatpush1.bf16.msra.mxu0 0
    %1010 = vmatprep.subr.bf16.mxu0 0
    %1011 = vmatpush1.bf16.msra.mxu0 0
    %1012 = vmatprep.subr.bf16.mxu0 0
    %1013 = vmatpush1.bf16.msra.mxu0 %v246
    %1014 = vmatprep.subr.bf16.mxu0 0
    %1015 = vmatpush1.bf16.msra.mxu0 %v245
    %1016 = vmatprep.subr.bf16.mxu0 0
    %1017 = vmatpush2.bf16.msra.mxu0 0
    %1018 = vmatprep.subr.bf16.mxu0 0
    %1019 = vmatpush2.bf16.msra.mxu0 0
    %1020 = vmatprep.subr.bf16.mxu0 0
    %1021 = vmatpush2.bf16.msra.mxu0 0
    %1022 = vmatprep.subr.bf16.mxu0 0
    %1023 = vmatpush2.bf16.msra.mxu0 0
    %1024 = vmatprep.subr.bf16.mxu0 0
    %1025 = vmatpush2.bf16.msra.mxu0 0
    %1026 = vmatprep.subr.bf16.mxu0 0
    %1027 = vmatpush2.bf16.msra.mxu0 0
    %1028 = vmatprep.subr.bf16.mxu0 0
    %1029 = vmatpush2.bf16.msra.mxu0 0
    %1030 = vmatprep.subr.bf16.mxu0 0
    %1031 = vmatpush2.bf16.msra.mxu0 0
    %1032 = vmatprep.mubr.bf16.mxu0 0
    %1033 = vmatmul.mubr.bf16.gmra.mxu0 %v998
    %v1034 = vpop.f32.mrf.mxu0
    %v1035 = vadd.f32 0.0, %v1034
    %v1036 = vpop.f32.mrf.mxu0
    %v1037 = vpop.f32.mrf.mxu0
    %v1038 = vpop.f32.mrf.mxu0
    %1039 = vdwg.mxu0
    %v1040 = vadd.f32 %v139, %v1035
    %v1041 = vxor.u32 %v1040, 2147483648
    %v1042 = vmul.f32 %v1041, 1.442695
    %v1043 = vpow.pop %v1042
    %v1044 = vadd.f32 %v1043, 1.0
    %v1045 = vrcp.pop %v1044
    %v1046 = vmul.f32 1.0, %v1045
    %1047 = vmatprep.subr.bf16.mxu0 0
    %1048 = vmatpush1.bf16.msra.mxu0 0
    %1049 = vmatprep.subr.bf16.mxu0 0
    %1050 = vmatpush1.bf16.msra.mxu0 0
    %1051 = vmatprep.subr.bf16.mxu0 0
    %1052 = vmatpush1.bf16.msra.mxu0 0
    %1053 = vmatprep.subr.bf16.mxu0 0
    %1054 = vmatpush1.bf16.msra.mxu0 0
    %1055 = vmatprep.subr.bf16.mxu0 0
    %1056 = vmatpush1.bf16.msra.mxu0 0
    %1057 = vmatprep.subr.bf16.mxu0 0
    %1058 = vmatpush1.bf16.msra.mxu0 0
    %1059 = vmatprep.subr.bf16.mxu0 0
    %1060 = vmatpush1.bf16.msra.mxu0 %v309
    %1061 = vmatprep.subr.bf16.mxu0 0
    %1062 = vmatpush1.bf16.msra.mxu0 %v308
    %1063 = vmatprep.subr.bf16.mxu0 0
    %1064 = vmatpush2.bf16.msra.mxu0 0
    %1065 = vmatprep.subr.bf16.mxu0 0
    %1066 = vmatpush2.bf16.msra.mxu0 0
    %1067 = vmatprep.subr.bf16.mxu0 0
    %1068 = vmatpush2.bf16.msra.mxu0 0
    %1069 = vmatprep.subr.bf16.mxu0 0
    %1070 = vmatpush2.bf16.msra.mxu0 0
    %1071 = vmatprep.subr.bf16.mxu0 0
    %1072 = vmatpush2.bf16.msra.mxu0 0
    %1073 = vmatprep.subr.bf16.mxu0 0
    %1074 = vmatpush2.bf16.msra.mxu0 0
    %1075 = vmatprep.subr.bf16.mxu0 0
    %1076 = vmatpush2.bf16.msra.mxu0 0
    %1077 = vmatprep.subr.bf16.mxu0 0
    %1078 = vmatpush2.bf16.msra.mxu0 0
    %1079 = vmatprep.mubr.bf16.mxu0 0
    %1080 = vmatmul.mubr.bf16.gmra.mxu0 %v998
    %v1081 = vpop.f32.mrf.mxu0
    %v1082 = vadd.f32 %v235, %v1081
    %v1083 = vpop.f32.mrf.mxu0
    %v1084 = vpop.f32.mrf.mxu0
    %v1085 = vpop.f32.mrf.mxu0
    %1086 = vdwg.mxu0
    %v1087 = vmul.f32 %v1046, %v1082
    %v1088 = vadd.f32 %v219, %v1087
    %v1089 = vtanh.pop %v1088
    %v1090 = vsub.f32 %v995, %v1089
    %1092 = vrot.lane.b32.xlu0 %v1090, 32
    %v1093 = vpop.permute.xlu0 %1092
    %v1095 = vmul.f32 %v1046, %v1093
    %1097 = vrot.lane.b32.xlu0 %v1095, 96
    %v1098 = vpop.permute.xlu0 %1097
    %v1100 = vadd.f32 %v1089, %v1098
    %v1101 = vpack.c.bf16 %v1100, %v1100
    %v1102 = vld [vmem:[%s8] sm:$0xf]
    %v1103 = vld [vmem:[%s8 + $0x4] sm:$0xf]
    %v1104 = vld [vmem:[%s8 + $0x8] sm:$0xf]
    %v1105 = vld [vmem:[%s8 + $0xc] sm:$0xf]
    %v1110 = vunpack.c.l.b16 %v1102
    %v1111 = vunpack.c.l.b16 %v1103
    %v1112 = vunpack.c.l.b16 %v1104
    %v1113 = vunpack.c.l.b16 %v1105
    %v1114 = vpack.c.b16 %v1111, %v1110
    %v1115 = vpack.c.b16 %v1113, %v1112
    %v1119 = vsel %vm249, %v1101, 0
    %1121 = vmatprep.subr.bf16.mxu0 0
    %1122 = vmatpush1.bf16.msra.mxu0 0
    %1123 = vmatprep.subr.bf16.mxu0 0
    %1124 = vmatpush1.bf16.msra.mxu0 0
    %1125 = vmatprep.subr.bf16.mxu0 0
    %1126 = vmatpush1.bf16.msra.mxu0 0
    %1127 = vmatprep.subr.bf16.mxu0 0
    %1128 = vmatpush1.bf16.msra.mxu0 0
    %1129 = vmatprep.subr.bf16.mxu0 0
    %1130 = vmatpush1.bf16.msra.mxu0 0
    %1131 = vmatprep.subr.bf16.mxu0 0
    %1132 = vmatpush1.bf16.msra.mxu0 0
    %1133 = vmatprep.subr.bf16.mxu0 0
    %1134 = vmatpush1.bf16.msra.mxu0 %v1115
    %1135 = vmatprep.subr.bf16.mxu0 0
    %1136 = vmatpush1.bf16.msra.mxu0 %v1114
    %1137 = vmatprep.subr.bf16.mxu0 0
    %1138 = vmatpush2.bf16.msra.mxu0 0
    %1139 = vmatprep.subr.bf16.mxu0 0
    %1140 = vmatpush2.bf16.msra.mxu0 0
    %1141 = vmatprep.subr.bf16.mxu0 0
    %1142 = vmatpush2.bf16.msra.mxu0 0
    %1143 = vmatprep.subr.bf16.mxu0 0
    %1144 = vmatpush2.bf16.msra.mxu0 0
    %1145 = vmatprep.subr.bf16.mxu0 0
    %1146 = vmatpush2.bf16.msra.mxu0 0
    %1147 = vmatprep.subr.bf16.mxu0 0
    %1148 = vmatpush2.bf16.msra.mxu0 0
    %1149 = vmatprep.subr.bf16.mxu0 0
    %1150 = vmatpush2.bf16.msra.mxu0 0
    %1151 = vmatprep.subr.bf16.mxu0 0
    %1152 = vmatpush2.bf16.msra.mxu0 0
    %1153 = vmatprep.mubr.bf16.mxu0 0
    %1154 = vmatmul.mubr.bf16.gmra.mxu0 %v1119
    %v1155 = vpop.f32.mrf.mxu0
    %v1156 = vadd.f32 0.0, %v1155
    %v1157 = vpop.f32.mrf.mxu0
    %v1158 = vpop.f32.mrf.mxu0
    %v1159 = vpop.f32.mrf.mxu0
    %1160 = vdwg.mxu0
    %v1161 = vmax.f32 %v1156, 0.0
    %v1162 = vpack.c.bf16 %v1161, %v1161
    %v1163 = vld [vmem:[%s9] sm:$0xf]
    %v1164 = vld [vmem:[%s9 + $0x4] sm:$0xf]
    %v1167 = vunpack.c.l.b16 %v1163
    %v1168 = vunpack.c.l.b16 %v1164
    %v1169 = vpack.c.b16 %v1168, %v1167
    %v1172 = vsel %vm64, %v1162, 0
    %1174 = vmatprep.subr.bf16.mxu0 0
    %1175 = vmatpush1.bf16.msra.mxu0 0
    %1176 = vmatprep.subr.bf16.mxu0 0
    %1177 = vmatpush1.bf16.msra.mxu0 0
    %1178 = vmatprep.subr.bf16.mxu0 0
    %1179 = vmatpush1.bf16.msra.mxu0 0
    %1180 = vmatprep.subr.bf16.mxu0 0
    %1181 = vmatpush1.bf16.msra.mxu0 0
    %1182 = vmatprep.subr.bf16.mxu0 0
    %1183 = vmatpush1.bf16.msra.mxu0 0
    %1184 = vmatprep.subr.bf16.mxu0 0
    %1185 = vmatpush1.bf16.msra.mxu0 0
    %1186 = vmatprep.subr.bf16.mxu0 0
    %1187 = vmatpush1.bf16.msra.mxu0 0
    %1188 = vmatprep.subr.bf16.mxu0 0
    %1189 = vmatpush1.bf16.msra.mxu0 %v1169
    %1190 = vmatprep.subr.bf16.mxu0 0
    %1191 = vmatpush2.bf16.msra.mxu0 0
    %1192 = vmatprep.subr.bf16.mxu0 0
    %1193 = vmatpush2.bf16.msra.mxu0 0
    %1194 = vmatprep.subr.bf16.mxu0 0
    %1195 = vmatpush2.bf16.msra.mxu0 0
    %1196 = vmatprep.subr.bf16.mxu0 0
    %1197 = vmatpush2.bf16.msra.mxu0 0
    %1198 = vmatprep.subr.bf16.mxu0 0
    %1199 = vmatpush2.bf16.msra.mxu0 0
    %1200 = vmatprep.subr.bf16.mxu0 0
    %1201 = vmatpush2.bf16.msra.mxu0 0
    %1202 = vmatprep.subr.bf16.mxu0 0
    %1203 = vmatpush2.bf16.msra.mxu0 0
    %1204 = vmatprep.subr.bf16.mxu0 0
    %1205 = vmatpush2.bf16.msra.mxu0 0
    %1206 = vmatprep.mubr.bf16.mxu0 0
    %1207 = vmatmul.mubr.bf16.gmra.mxu0 %v1172
    %v1208 = vpop.f32.mrf.mxu0
    %v1209 = vadd.f32 0.0, %v1208
    %v1210 = vpop.f32.mrf.mxu0
    %v1211 = vpop.f32.mrf.mxu0
    %v1212 = vpop.f32.mrf.mxu0
    %1213 = vdwg.mxu0
    %vm1214 = vcmask 64512
    %1215 = vst.msk [vmem:[#allocation2] sm:$0xff] %vm1214, %v1209
    // Predicated region
    $region42: #{tpu_custom_call.1} parent=1 // pred_check
      _
    $region43: #{tpu_custom_call.1} parent=1 // pred_check_branch
      %1217 = sbr.rel (0) target = $region45
    $region44: #{tpu_custom_call.1} parent=1 // pred_region
      %s1219 = ssub.s32 128, 128
      %1220 = vsyncadd [#allocation3], %s1219
      %s1222 = sshll.u32 [#allocation2], 4
      %s1223 = int_to_ptr.vmem [resolvable:$true] %s1222
      %1225 = dma.vmem_to_hbm [thread:$0]  %s1223, 128, %s10, [#allocation3]
    $region45: #{tpu_custom_call.1} parent=1 // pred_fallthru
      _
    // Predicated region
    $region46: #{tpu_custom_call.1} parent=1 // pred_check
      _
    $region47: #{tpu_custom_call.1} parent=1 // pred_check_branch
      %1227 = sbr.rel (0) target = $region49
    $region48: #{tpu_custom_call.1} parent=1 // pred_region
      %1228 = dma.done [#allocation3], 128
    $region49: #{tpu_custom_call.1} parent=1 // pred_fallthru
      _
    %1229 = vsyncpa [#allocation3], 1

</llo_original>
